<compile_context>
chip_gen: v7x
topology: tpu7x:2x2x1
jax: 0.10.0
libtpu: 0.0.40
codegen_flags: <defaults>
</compile_context>

<pallas_src>
import functools
import math

import jax
import jax.numpy as jnp
from jax.experimental import pallas as pl
from jax.experimental.pallas import tpu as pltpu

# Small, module-consistent sizes.
BATCH = 2
NUM_HEADS = 4
HEAD_SIZE = 8
SEQ = 8
D_MODEL = NUM_HEADS * HEAD_SIZE  # 32


def mha_kernel(x_ref, bias_ref, wqkv_ref, bq_ref, wo_ref, bo_ref, out_ref, *,
               num_heads):
    """One grid step = one batch element; full multi-head attention forward."""
    h = num_heads
    x = x_ref[...]                                             # (S, Dm)
    seq, d_model = x.shape

    # ---- QKV projection, heads pre-split on the weight side -----------------
    # wqkv_ref: (3H, Dm, D).  Broadcasting x along the new leading (3H) axis is
    # a cheap leading-dim copy; the batched MXU matmul then emits q/k/v already
    # head-major, so no cross-lane (XLU) relayout is needed anywhere below.
    xb = jnp.broadcast_to(x[None], (3 * h, seq, d_model))      # (3H, S, Dm)
    qkv = jnp.einsum('nsd,nde->nse', xb, wqkv_ref[...],
                     preferred_element_type=jnp.float32)       # (3H, S, D)

    q = qkv[:h] + bq_ref[...]        # (H, S, D); 1/sqrt(D) & b_q pre-folded
    k = qkv[h:2 * h]                 # b_k dropped (softmax-invariant)
    v = qkv[2 * h:]                  # b_v folded into the output bias

    # ---- attention scores + additive padding bias ----------------------------
    scores = jnp.einsum('hqd,hkd->hqk', q, k,
                        preferred_element_type=jnp.float32)    # (H, S, S)
    scores = scores + bias_ref[...]                            # (1, S) -> keys

    # ---- softmax (exp on the EUP; exact normalization) -----------------------
    m = jnp.max(scores, axis=-1, keepdims=True)
    p = jnp.exp(scores - m)
    l = jnp.sum(p, axis=-1, keepdims=True)
    weights = p * pl.reciprocal(l, approx=False)

    ctx = jnp.einsum('hqk,hkd->hqd', weights, v,
                     preferred_element_type=jnp.float32)       # (H, S, D)

    # ---- output projection with the head merge folded in ---------------------
    # wo_ref: (H, D, Dm); the sum over the leading head axis is plain VPU adds.
    y = jnp.einsum('hsd,hde->hse', ctx, wo_ref[...],
                   preferred_element_type=jnp.float32)         # (H, S, Dm)
    out = jnp.sum(y, axis=0) + bo_ref[...]                     # (S, Dm)
    out_ref[...] = out.astype(out_ref.dtype)


def multi_headed_attention(hidden_states, params, mask=None,
                           num_heads=NUM_HEADS, head_size=HEAD_SIZE):
    """hidden_states: (B, S, num_heads*head_size) f32; mask: optional (B, S)
       int (0 = padding).  Returns (B, S, Dm)."""
    B, S, Dm = hidden_states.shape
    assert Dm == num_heads * head_size
    if mask is None:
        mask = jnp.ones((B, S), dtype=jnp.int32)

    wq, bq, wk, bk, wv, bv, wo, bo = params
    scale = jnp.float32(1.0 / math.sqrt(head_size))

    def to_heads(w):                       # (Dm, H*D) -> (H, Dm, D)
        return w.reshape(Dm, num_heads, head_size).transpose(1, 0, 2)

    # Fused, head-major QKV weights; attention scale folded into the Q slice.
    wqkv_heads = jnp.concatenate(
        [to_heads(wq * scale), to_heads(wk), to_heads(wv)], axis=0)  # (3H,Dm,D)
    bq_heads = (bq[0] * scale).reshape(num_heads, 1, head_size)      # (H,1,D)
    wo_heads = wo.reshape(num_heads, head_size, Dm)                  # (H,D,Dm)
    bo_fused = bo + bv @ wo        # b_v folded: attention weights sum to 1

    # Additive padding bias, built once in f32 (kernel just adds it).
    bias = jnp.where(mask == 0, jnp.float32(-1e9),
                     jnp.float32(0.0)).reshape(B, 1, S)

    const3 = lambda shape: pl.BlockSpec(shape, lambda b: (0, 0, 0))
    kernel = functools.partial(mha_kernel, num_heads=num_heads)

    out = pl.pallas_call(
        kernel,
        out_shape=jax.ShapeDtypeStruct((B, S, Dm), hidden_states.dtype),
        grid_spec=pltpu.PrefetchScalarGridSpec(
            num_scalar_prefetch=0,
            grid=(B,),                                          # one batch / step
            in_specs=[
                pl.BlockSpec((None, S, Dm), lambda b: (b, 0, 0)),   # x[b]
                pl.BlockSpec((None, 1, S), lambda b: (b, 0, 0)),    # mask bias[b]
                const3((3 * num_heads, Dm, head_size)),             # W_qkv (resident)
                const3((num_heads, 1, head_size)),                  # b_q   (resident)
                const3((num_heads, head_size, Dm)),                 # W_o   (resident)
                pl.BlockSpec((1, Dm), lambda b: (0, 0)),            # b_o'  (resident)
            ],
            out_specs=pl.BlockSpec((None, S, Dm), lambda b: (b, 0, 0)),
        ),
        compiler_params=pltpu.CompilerParams(
            dimension_semantics=("parallel",)),   # megacore split on v7x
    )(hidden_states, bias, wqkv_heads, bq_heads, wo_heads, bo_fused)
    return out


def init_params(key, d_model):
    """Deterministic nn.Linear-style init: weight (in, out) = torch weight^T."""
    keys = jax.random.split(key, 8)
    bound = 1.0 / math.sqrt(d_model)
    params = []
    for i in range(4):  # W_q, W_k, W_v, W_o
        w = jax.random.uniform(keys[2 * i], (d_model, d_model),
                               minval=-bound, maxval=bound, dtype=jnp.float32)
        b = jax.random.uniform(keys[2 * i + 1], (1, d_model),
                               minval=-bound, maxval=bound, dtype=jnp.float32)
        params.extend([w, b])
    return tuple(params)


def reference_mha(x, params, mask=None, num_heads=NUM_HEADS,
                  head_size=HEAD_SIZE):
    """Pure-JAX reference mirroring the PyTorch forward (HIGHEST precision)."""
    wq, bq, wk, bk, wv, bv, wo, bo = params
    hp = jax.lax.Precision.HIGHEST
    B, S, Dm = x.shape
    q = jnp.dot(x, wq, precision=hp) + bq[0]
    k = jnp.dot(x, wk, precision=hp) + bk[0]
    v = jnp.dot(x, wv, precision=hp) + bv[0]

    def split(t):
        return t.reshape(B, S, num_heads, head_size).transpose(0, 2, 1, 3)

    q, k, v = split(q), split(k), split(v)
    scores = jnp.einsum('bhqd,bhkd->bhqk', q, k,
                        precision=hp) / math.sqrt(head_size)
    if mask is not None:
        scores = jnp.where(mask[:, None, None, :] == 0, -1e9, scores)
    w = jax.nn.softmax(scores, axis=-1)
    y = jnp.einsum('bhqk,bhkd->bhqd', w, v, precision=hp)
    y = y.transpose(0, 2, 1, 3).reshape(B, S, Dm)
    return jnp.dot(y, wo, precision=hp) + bo[0]


if __name__ == "__main__":
    key = jax.random.PRNGKey(0)
    k_x, k_p = jax.random.split(key)

    hidden_states = jax.random.normal(k_x, (BATCH, SEQ, D_MODEL),
                                      dtype=jnp.float32)
    params = init_params(k_p, D_MODEL)

    # Mask: last two positions of sequence 1 are padding, sequence 0 is full.
    mask = jnp.ones((BATCH, SEQ), dtype=jnp.int32).at[1, -2:].set(0)

    out = multi_headed_attention(hidden_states, params, mask)
    out = jax.block_until_ready(out)

    ref = reference_mha(hidden_states, params, mask)
    assert out.shape == (BATCH, SEQ, D_MODEL)
    # Exact softmax normalization; remaining diffs are fp reassociation from
    # the (exact) b_k / b_v folding and MXU accumulation order.
    assert jnp.allclose(out, ref, atol=1e-3, rtol=1e-3), "mismatch vs reference"

    print("KERNEL_OK")
</pallas_src>

<mosaic_0001>
module attributes {stable_mosaic.version = 11 : i64} {
  func.func @mha_kernel(%arg0: i32, %arg1: memref<1x8x32xf32, #tpu.memory_space<vmem>>, %arg2: memref<1x1x8xf32, #tpu.memory_space<vmem>>, %arg3: memref<12x32x8xf32, #tpu.memory_space<vmem>>, %arg4: memref<4x1x8xf32, #tpu.memory_space<vmem>>, %arg5: memref<4x8x32xf32, #tpu.memory_space<vmem>>, %arg6: memref<1x32xf32, #tpu.memory_space<vmem>>, %arg7: memref<1x8x32xf32, #tpu.memory_space<vmem>>) attributes {dimension_semantics = [#tpu.dimension_semantics<parallel>], iteration_bounds = array<i64: 2>, scalar_prefetch = 0 : i64, scratch_operands = 0 : i64, tpu.core_type = #tpu.core_type<tc>, window_params = [{transform_indices = @transform_0, window_bounds = array<i64: 1, 8, 32>}, {transform_indices = @transform_1, window_bounds = array<i64: 1, 1, 8>}, {pipeline_mode = #tpu.pipeline_mode<synchronous>, transform_indices = @transform_2, window_bounds = array<i64: 12, 32, 8>}, {pipeline_mode = #tpu.pipeline_mode<synchronous>, transform_indices = @transform_3, window_bounds = array<i64: 4, 1, 8>}, {pipeline_mode = #tpu.pipeline_mode<synchronous>, transform_indices = @transform_4, window_bounds = array<i64: 4, 8, 32>}, {pipeline_mode = #tpu.pipeline_mode<synchronous>, transform_indices = @transform_5, window_bounds = array<i64: 1, 32>}, {transform_indices = @transform_6, window_bounds = array<i64: 1, 8, 32>}]} {
    %c0 = arith.constant 0 : index
    %c0_0 = arith.constant 0 : index
    %c0_1 = arith.constant 0 : index
    %0 = vector.load %arg1[%c0, %c0_0, %c0_1] : memref<1x8x32xf32, #tpu.memory_space<vmem>>, vector<1x8x32xf32>
    %1 = vector.shape_cast %0 : vector<1x8x32xf32> to vector<8x32xf32>
    %2 = vector.shape_cast %1 : vector<8x32xf32> to vector<1x8x32xf32>
    %3 = vector.shape_cast %2 : vector<1x8x32xf32> to vector<1x8x32xf32>
    %4 = vector.broadcast %3 : vector<1x8x32xf32> to vector<12x8x32xf32>
    %c0_2 = arith.constant 0 : index
    %c0_3 = arith.constant 0 : index
    %c0_4 = arith.constant 0 : index
    %5 = vector.load %arg3[%c0_2, %c0_3, %c0_4] : memref<12x32x8xf32, #tpu.memory_space<vmem>>, vector<12x32x8xf32>
    "tpu.trace_start"() <{level = 10 : i32, message = "nsd,nde->nse"}> : () -> ()
    %cst = arith.constant dense<0.000000e+00> : vector<12x8x8xf32>
    %6 = tpu.matmul %4, %5, %cst {dimension_numbers = #tpu.dot_dimension_numbers<[2], [1], [1], [2], [0, 0, 0, 1, 1, 2], [0], [0]>} : vector<12x8x32xf32>, vector<12x32x8xf32>, vector<12x8x8xf32> -> vector<12x8x8xf32>
    "tpu.trace_stop"() : () -> ()
    %7 = vector.extract_strided_slice %6 {offsets = [0, 0, 0], sizes = [4, 8, 8], strides = [1, 1, 1]} : vector<12x8x8xf32> to vector<4x8x8xf32>
    %c0_5 = arith.constant 0 : index
    %c0_6 = arith.constant 0 : index
    %c0_7 = arith.constant 0 : index
    %8 = vector.load %arg4[%c0_5, %c0_6, %c0_7] : memref<4x1x8xf32, #tpu.memory_space<vmem>>, vector<4x1x8xf32>
    %9 = vector.broadcast %8 : vector<4x1x8xf32> to vector<4x8x8xf32>
    %10 = arith.addf %7, %9 : vector<4x8x8xf32>
    %11 = vector.extract_strided_slice %6 {offsets = [4, 0, 0], sizes = [4, 8, 8], strides = [1, 1, 1]} : vector<12x8x8xf32> to vector<4x8x8xf32>
    %12 = vector.extract_strided_slice %6 {offsets = [8, 0, 0], sizes = [4, 8, 8], strides = [1, 1, 1]} : vector<12x8x8xf32> to vector<4x8x8xf32>
    "tpu.trace_start"() <{level = 10 : i32, message = "hqd,hkd->hqk"}> : () -> ()
    %cst_8 = arith.constant dense<0.000000e+00> : vector<4x8x8xf32>
    %13 = tpu.matmul %10, %11, %cst_8 {dimension_numbers = #tpu.dot_dimension_numbers<[2], [2], [1], [1], [0, 0, 0, 1, 1, 1], [0], [0]>} : vector<4x8x8xf32>, vector<4x8x8xf32>, vector<4x8x8xf32> -> vector<4x8x8xf32>
    "tpu.trace_stop"() : () -> ()
    %c0_9 = arith.constant 0 : index
    %c0_10 = arith.constant 0 : index
    %c0_11 = arith.constant 0 : index
    %14 = vector.load %arg2[%c0_9, %c0_10, %c0_11] : memref<1x1x8xf32, #tpu.memory_space<vmem>>, vector<1x1x8xf32>
    %15 = vector.shape_cast %14 : vector<1x1x8xf32> to vector<1x8xf32>
    %16 = vector.shape_cast %15 : vector<1x8xf32> to vector<1x1x8xf32>
    %17 = vector.broadcast %16 : vector<1x1x8xf32> to vector<4x8x8xf32>
    %18 = arith.addf %13, %17 : vector<4x8x8xf32>
    %cst_12 = arith.constant dense<0xFF800000> : vector<4x8xf32>
    %19 = vector.multi_reduction <maximumf>, %18, %cst_12 [2] : vector<4x8x8xf32> to vector<4x8xf32>
    %20 = vector.shape_cast %19 : vector<4x8xf32> to vector<4x8x1xf32>
    %21 = vector.broadcast %20 : vector<4x8x1xf32> to vector<4x8x8xf32>
    %22 = arith.subf %18, %21 : vector<4x8x8xf32>
    %23 = math.exp %22 : vector<4x8x8xf32>
    %cst_13 = arith.constant dense<0.000000e+00> : vector<4x8xf32>
    %24 = vector.multi_reduction <add>, %23, %cst_13 [2] : vector<4x8x8xf32> to vector<4x8xf32>
    %25 = vector.shape_cast %24 : vector<4x8xf32> to vector<4x8x1xf32>
    %26 = tpu.reciprocal %25 : vector<4x8x1xf32> -> vector<4x8x1xf32>
    %27 = vector.broadcast %26 : vector<4x8x1xf32> to vector<4x8x8xf32>
    %28 = arith.mulf %23, %27 : vector<4x8x8xf32>
    "tpu.trace_start"() <{level = 10 : i32, message = "hqk,hkd->hqd"}> : () -> ()
    %cst_14 = arith.constant dense<0.000000e+00> : vector<4x8x8xf32>
    %29 = tpu.matmul %28, %12, %cst_14 {dimension_numbers = #tpu.dot_dimension_numbers<[2], [1], [1], [2], [0, 0, 0, 1, 1, 2], [0], [0]>} : vector<4x8x8xf32>, vector<4x8x8xf32>, vector<4x8x8xf32> -> vector<4x8x8xf32>
    "tpu.trace_stop"() : () -> ()
    %c0_15 = arith.constant 0 : index
    %c0_16 = arith.constant 0 : index
    %c0_17 = arith.constant 0 : index
    %30 = vector.load %arg5[%c0_15, %c0_16, %c0_17] : memref<4x8x32xf32, #tpu.memory_space<vmem>>, vector<4x8x32xf32>
    "tpu.trace_start"() <{level = 10 : i32, message = "hsd,hde->hse"}> : () -> ()
    %cst_18 = arith.constant dense<0.000000e+00> : vector<4x8x32xf32>
    %31 = tpu.matmul %29, %30, %cst_18 {dimension_numbers = #tpu.dot_dimension_numbers<[2], [1], [1], [2], [0, 0, 0, 1, 1, 2], [0], [0]>} : vector<4x8x8xf32>, vector<4x8x32xf32>, vector<4x8x32xf32> -> vector<4x8x32xf32>
    "tpu.trace_stop"() : () -> ()
    %cst_19 = arith.constant dense<0.000000e+00> : vector<8x32xf32>
    %32 = vector.multi_reduction <add>, %31, %cst_19 [0] : vector<4x8x32xf32> to vector<8x32xf32>
    %c0_20 = arith.constant 0 : index
    %c0_21 = arith.constant 0 : index
    %33 = vector.load %arg6[%c0_20, %c0_21] : memref<1x32xf32, #tpu.memory_space<vmem>>, vector<1x32xf32>
    %34 = vector.broadcast %33 : vector<1x32xf32> to vector<8x32xf32>
    %35 = arith.addf %32, %34 : vector<8x32xf32>
    %c0_22 = arith.constant 0 : index
    %c0_23 = arith.constant 0 : index
    %c0_24 = arith.constant 0 : index
    %36 = vector.load %arg7[%c0_22, %c0_23, %c0_24] : memref<1x8x32xf32, #tpu.memory_space<vmem>>, vector<1x8x32xf32>
    %37 = vector.shape_cast %36 : vector<1x8x32xf32> to vector<8x32xf32>
    %38 = vector.shape_cast %35 : vector<8x32xf32> to vector<1x8x32xf32>
    tpu.vector_store %arg7[%c0_22, %c0_23, %c0_24], %38 {strides = array<i32>} : memref<1x8x32xf32, #tpu.memory_space<vmem>>, vector<1x8x32xf32>,
    return
  }
  func.func @transform_0(%arg0: i32) -> (i32, i32, i32) {
    %c0_i32 = arith.constant 0 : i32
    %c0_i32_0 = arith.constant 0 : i32
    %c0_i32_1 = arith.constant 0 : i32
    return %arg0, %c0_i32, %c0_i32_0 : i32, i32, i32
  }
  func.func @transform_1(%arg0: i32) -> (i32, i32, i32) {
    %c0_i32 = arith.constant 0 : i32
    %c0_i32_0 = arith.constant 0 : i32
    %c0_i32_1 = arith.constant 0 : i32
    return %arg0, %c0_i32, %c0_i32_0 : i32, i32, i32
  }
  func.func @transform_2(%arg0: i32) -> (i32, i32, i32) {
    %c0_i32 = arith.constant 0 : i32
    %c0_i32_0 = arith.constant 0 : i32
    %c0_i32_1 = arith.constant 0 : i32
    %c0_i32_2 = arith.constant 0 : i32
    return %c0_i32, %c0_i32_0, %c0_i32_1 : i32, i32, i32
  }
  func.func @transform_3(%arg0: i32) -> (i32, i32, i32) {
    %c0_i32 = arith.constant 0 : i32
    %c0_i32_0 = arith.constant 0 : i32
    %c0_i32_1 = arith.constant 0 : i32
    %c0_i32_2 = arith.constant 0 : i32
    return %c0_i32, %c0_i32_0, %c0_i32_1 : i32, i32, i32
  }
  func.func @transform_4(%arg0: i32) -> (i32, i32, i32) {
    %c0_i32 = arith.constant 0 : i32
    %c0_i32_0 = arith.constant 0 : i32
    %c0_i32_1 = arith.constant 0 : i32
    %c0_i32_2 = arith.constant 0 : i32
    return %c0_i32, %c0_i32_0, %c0_i32_1 : i32, i32, i32
  }
  func.func @transform_5(%arg0: i32) -> (i32, i32) {
    %c0_i32 = arith.constant 0 : i32
    %c0_i32_0 = arith.constant 0 : i32
    %c0_i32_1 = arith.constant 0 : i32
    return %c0_i32, %c0_i32_0 : i32, i32
  }
  func.func @transform_6(%arg0: i32) -> (i32, i32, i32) {
    %c0_i32 = arith.constant 0 : i32
    %c0_i32_0 = arith.constant 0 : i32
    %c0_i32_1 = arith.constant 0 : i32
    return %arg0, %c0_i32, %c0_i32_0 : i32, i32, i32
  }
}

</mosaic_0001>

<llo_original>
// kernel: tpu_custom_call.1
$region0: #{tpu_custom_call.1}
  #allocation0 [shape = 'u32[]', space=smem, size = 0x4, offset = 0x4, fixed_abs, tag = 'smem constant byte address 0x4 - core index']
  #allocation1 [shape = 'u32[144,128]{1,0:T(1,128)}', space=vmem, size = 0x12000, scoped, tag = 'internal scratch']
  %s0 = inlined_call_operand.vmem [shape: f32[2,8,32], index: 0, kind: input, shape index: {}]
  %s1 = inlined_call_operand.vmem [shape: f32[2,1,8], index: 1, kind: input, shape index: {}]
  %s2 = inlined_call_operand.vmem [shape: f32[12,32,8], index: 2, kind: input, shape index: {}]
  %s3 = inlined_call_operand.vmem [shape: f32[4,1,8], index: 3, kind: input, shape index: {}]
  %s4 = inlined_call_operand.vmem [shape: f32[4,8,32], index: 4, kind: input, shape index: {}]
  %s5 = inlined_call_operand.vmem [shape: f32[1,32], index: 5, kind: input, shape index: {}]
  %s6 = inlined_call_operand.hbm [shape: f32[2,8,32], index: 6, kind: output, shape index: {}]
  %s7 = sld [smem:[#allocation0]]
  $region57: #{tpu_custom_call.1} parent=0
    _
  %s9 = ssub.s32 1, %s7
  %s10 = scalar_select 0, %s9, %s7
  $region1: #{tpu_custom_call.1} parent=0
    #allocation2 [shape = 'u8[8192]{0}', space=vmem, size = 0x2000, scoped, tag = 'output window, operand 0']
    #allocation3 [shape = 's32[2]{0}', space=sflag, size = 0x8, scoped, tag = 'scoped memory for tpu_custom_call.1']
    %11 = vsyncpa [#allocation3], 0
    %s12 = scalar_lea.sflag [#allocation3], 1
    %13 = vsyncpa %s12, 0
    loop: start=0, step=1, limit=4
    $region2: #{tpu_custom_call.1} parent=1 // loop_pre_header
      _
    $region3: #{tpu_custom_call.1} parent=1 // loop_header
      %s15 = sphi 0, %s19
      %p16 = scmp.ge.s32.totalorder %s15, 4
      %s25 = sphi 0, %s27
      %s28 = sphi 0, %s25
      %s29 = sphi 0, %s28
      %s45 = sphi 0, %s29
      %s51 = sphi 0, %s53
      %s54 = sphi 0, %s51
      %s55 = sphi 0, %s54
      %s71 = sphi 0, %s55
      %s75 = sphi 0, %s75
      %s77 = sphi 0, %s75
      %s78 = sphi 0, %s77
      %s92 = sphi 0, %s78
      %s96 = sphi 0, %s96
      %s98 = sphi 0, %s96
      %s99 = sphi 0, %s98
      %s113 = sphi 0, %s99
      %s117 = sphi 0, %s117
      %s119 = sphi 0, %s117
      %s120 = sphi 0, %s119
      %s134 = sphi 0, %s120
      %s138 = sphi 0, %s138
      %s140 = sphi 0, %s138
      %s141 = sphi 0, %s140
      %s155 = sphi 0, %s141
      %s161 = sphi 0, %s163
      %s164 = sphi 0, %s161
      %s165 = sphi 0, %s164
      %s181 = sphi 0, %s165
    $region4: #{tpu_custom_call.1} parent=1 // loop_header_branch
      %18 = sbr.rel (%p16) target = $region8
    $region5: #{tpu_custom_call.1} parent=1 // loop_body
      %s20 = ssub.s32 %s15, 1
      %s21 = ssub.s32 %s15, 2
      %s22 = sadd.s32 %s15, 1
      %s23 = ssub.s32 %s15, %s22
      %p24 = scmp.eq.s32.totalorder %s23, 0
      %s26 = sadd.s32 %s25, 1
      %s27 = scalar_select %p24, %s25, %s26
      %p30 = pneg %p24
      %p31 = scmp.eq.s32.totalorder %s15, 1
      %p32 = por %p30, %p31
      %p33 = scmp.ne.s32.totalorder %s25, %s28
      %p34 = scmp.eq.s32.totalorder %s15, 0
      %p35 = por %p33, %p34
      %p36 = scmp.ne.s32.totalorder %s25, %s28
      %p37 = scmp.eq.s32.totalorder %s20, 1
      %p38 = por %p36, %p37
      %p39 = scmp.ne.s32.totalorder %s28, %s29
      %p40 = scmp.eq.s32.totalorder %s20, 0
      %p41 = por %p39, %p40
      %p42 = scmp.ne.s32.totalorder %s28, %s29
      %p43 = scmp.eq.s32.totalorder %s21, 1
      %p44 = por %p42, %p43
      %p46 = scmp.ne.s32.totalorder %s29, %s45
      %p47 = scmp.eq.s32.totalorder %s21, 0
      %p48 = por %p46, %p47
      %s49 = ssub.s32 %s15, %s22
      %p50 = scmp.eq.s32.totalorder %s49, 0
      %s52 = sadd.s32 %s51, 1
      %s53 = scalar_select %p50, %s51, %s52
      %p56 = pneg %p50
      %p57 = scmp.eq.s32.totalorder %s15, 1
      %p58 = por %p56, %p57
      %p59 = scmp.ne.s32.totalorder %s51, %s54
      %p60 = scmp.eq.s32.totalorder %s15, 0
      %p61 = por %p59, %p60
      %p62 = scmp.ne.s32.totalorder %s51, %s54
      %p63 = scmp.eq.s32.totalorder %s20, 1
      %p64 = por %p62, %p63
      %p65 = scmp.ne.s32.totalorder %s54, %s55
      %p66 = scmp.eq.s32.totalorder %s20, 0
      %p67 = por %p65, %p66
      %p68 = scmp.ne.s32.totalorder %s54, %s55
      %p69 = scmp.eq.s32.totalorder %s21, 1
      %p70 = por %p68, %p69
      %p72 = scmp.ne.s32.totalorder %s55, %s71
      %p73 = scmp.eq.s32.totalorder %s21, 0
      %p74 = por %p72, %p73
      %s76 = sadd.s32 %s75, 1
      %p79 = scmp.eq.s32.totalorder %s15, 1
      %p80 = scmp.ne.s32.totalorder %s75, %s77
      %p81 = scmp.eq.s32.totalorder %s15, 0
      %p82 = por %p80, %p81
      %p83 = scmp.ne.s32.totalorder %s75, %s77
      %p84 = scmp.eq.s32.totalorder %s20, 1
      %p85 = por %p83, %p84
      %p86 = scmp.ne.s32.totalorder %s77, %s78
      %p87 = scmp.eq.s32.totalorder %s20, 0
      %p88 = por %p86, %p87
      %p89 = scmp.ne.s32.totalorder %s77, %s78
      %p90 = scmp.eq.s32.totalorder %s21, 1
      %p91 = por %p89, %p90
      %p93 = scmp.ne.s32.totalorder %s78, %s92
      %p94 = scmp.eq.s32.totalorder %s21, 0
      %p95 = por %p93, %p94
      %s97 = sadd.s32 %s96, 1
      %p100 = scmp.eq.s32.totalorder %s15, 1
      %p101 = scmp.ne.s32.totalorder %s96, %s98
      %p102 = scmp.eq.s32.totalorder %s15, 0
      %p103 = por %p101, %p102
      %p104 = scmp.ne.s32.totalorder %s96, %s98
      %p105 = scmp.eq.s32.totalorder %s20, 1
      %p106 = por %p104, %p105
      %p107 = scmp.ne.s32.totalorder %s98, %s99
      %p108 = scmp.eq.s32.totalorder %s20, 0
      %p109 = por %p107, %p108
      %p110 = scmp.ne.s32.totalorder %s98, %s99
      %p111 = scmp.eq.s32.totalorder %s21, 1
      %p112 = por %p110, %p111
      %p114 = scmp.ne.s32.totalorder %s99, %s113
      %p115 = scmp.eq.s32.totalorder %s21, 0
      %p116 = por %p114, %p115
      %s118 = sadd.s32 %s117, 1
      %p121 = scmp.eq.s32.totalorder %s15, 1
      %p122 = scmp.ne.s32.totalorder %s117, %s119
      %p123 = scmp.eq.s32.totalorder %s15, 0
      %p124 = por %p122, %p123
      %p125 = scmp.ne.s32.totalorder %s117, %s119
      %p126 = scmp.eq.s32.totalorder %s20, 1
      %p127 = por %p125, %p126
      %p128 = scmp.ne.s32.totalorder %s119, %s120
      %p129 = scmp.eq.s32.totalorder %s20, 0
      %p130 = por %p128, %p129
      %p131 = scmp.ne.s32.totalorder %s119, %s120
      %p132 = scmp.eq.s32.totalorder %s21, 1
      %p133 = por %p131, %p132
      %p135 = scmp.ne.s32.totalorder %s120, %s134
      %p136 = scmp.eq.s32.totalorder %s21, 0
      %p137 = por %p135, %p136
      %s139 = sadd.s32 %s138, 1
      %p142 = scmp.eq.s32.totalorder %s15, 1
      %p143 = scmp.ne.s32.totalorder %s138, %s140
      %p144 = scmp.eq.s32.totalorder %s15, 0
      %p145 = por %p143, %p144
      %p146 = scmp.ne.s32.totalorder %s138, %s140
      %p147 = scmp.eq.s32.totalorder %s20, 1
      %p148 = por %p146, %p147
      %p149 = scmp.ne.s32.totalorder %s140, %s141
      %p150 = scmp.eq.s32.totalorder %s20, 0
      %p151 = por %p149, %p150
      %p152 = scmp.ne.s32.totalorder %s140, %s141
      %p153 = scmp.eq.s32.totalorder %s21, 1
      %p154 = por %p152, %p153
      %p156 = scmp.ne.s32.totalorder %s141, %s155
      %p157 = scmp.eq.s32.totalorder %s21, 0
      %p158 = por %p156, %p157
      %s159 = ssub.s32 %s15, %s22
      %p160 = scmp.eq.s32.totalorder %s159, 0
      %s162 = sadd.s32 %s161, 1
      %s163 = scalar_select %p160, %s161, %s162
      %p166 = pneg %p160
      %p167 = scmp.eq.s32.totalorder %s15, 1
      %p168 = por %p166, %p167
      %p169 = scmp.ne.s32.totalorder %s161, %s164
      %p170 = scmp.eq.s32.totalorder %s15, 0
      %p171 = por %p169, %p170
      %p172 = scmp.ne.s32.totalorder %s161, %s164
      %p173 = scmp.eq.s32.totalorder %s20, 1
      %p174 = por %p172, %p173
      %p175 = scmp.ne.s32.totalorder %s164, %s165
      %p176 = scmp.eq.s32.totalorder %s20, 0
      %p177 = por %p175, %p176
      %p178 = scmp.ne.s32.totalorder %s164, %s165
      %p179 = scmp.eq.s32.totalorder %s21, 1
      %p180 = por %p178, %p179
      %p182 = scmp.ne.s32.totalorder %s165, %s181
      %p183 = scmp.eq.s32.totalorder %s21, 0
      %p184 = por %p182, %p183
      %p185 = scmp.le.s32.totalorder 1, %s15
      %p186 = scmp.lt.s32.totalorder %s15, 3
      %p187 = pnand %p185, %p186
      %p188 = pneg %p187
      // Predicated region
      $region9: #{tpu_custom_call.1} parent=5 // pred_check
        _
      $region10: #{tpu_custom_call.1} parent=5 // pred_check_branch
        %190 = sbr.rel (%p187) target = $region12
      $region11: #{tpu_custom_call.1} parent=5 // pred_region
        %s191 = ssub.s32 %s15, 1
        // Predicated region
        $region13: #{tpu_custom_call.1} parent=11 // pred_check
          %p192 = pneg %p88
        $region14: #{tpu_custom_call.1} parent=11 // pred_check_branch
          %194 = sbr.rel (%p192) target = $region16
        $region15: #{tpu_custom_call.1} parent=11 // pred_region
          _
        $region16: #{tpu_custom_call.1} parent=11 // pred_fallthru
          _
        // Predicated region
        $region17: #{tpu_custom_call.1} parent=11 // pred_check
          %p195 = pneg %p109
        $region18: #{tpu_custom_call.1} parent=11 // pred_check_branch
          %197 = sbr.rel (%p195) target = $region20
        $region19: #{tpu_custom_call.1} parent=11 // pred_region
          _
        $region20: #{tpu_custom_call.1} parent=11 // pred_fallthru
          _
        // Predicated region
        $region21: #{tpu_custom_call.1} parent=11 // pred_check
          %p198 = pneg %p130
        $region22: #{tpu_custom_call.1} parent=11 // pred_check_branch
          %200 = sbr.rel (%p198) target = $region24
        $region23: #{tpu_custom_call.1} parent=11 // pred_region
          _
        $region24: #{tpu_custom_call.1} parent=11 // pred_fallthru
          _
        // Predicated region
        $region25: #{tpu_custom_call.1} parent=11 // pred_check
          %p201 = pneg %p151
        $region26: #{tpu_custom_call.1} parent=11 // pred_check_branch
          %203 = sbr.rel (%p201) target = $region28
        $region27: #{tpu_custom_call.1} parent=11 // pred_region
          _
        $region28: #{tpu_custom_call.1} parent=11 // pred_fallthru
          _
      $region12: #{tpu_custom_call.1} parent=5 // pred_fallthru
        _
      %p204 = scmp.lt.s32.totalorder %s15, 2
      // Predicated region
      $region29: #{tpu_custom_call.1} parent=5 // pred_check
        %p205 = pneg %p204
      $region30: #{tpu_custom_call.1} parent=5 // pred_check_branch
        %207 = sbr.rel (%p205) target = $region32
      $region31: #{tpu_custom_call.1} parent=5 // pred_region
        // Predicated region
        $region33: #{tpu_custom_call.1} parent=31 // pred_check
          %p208 = pneg %p35
        $region34: #{tpu_custom_call.1} parent=31 // pred_check_branch
          %210 = sbr.rel (%p208) target = $region36
        $region35: #{tpu_custom_call.1} parent=31 // pred_region
          %p211 = scmp.lt.s32.totalorder %s15, 1
          %s212 = scalar_select %p211, %s15, 1
          %s213 = smul.addr %s212, 8
          %s214 = scalar_lea.vmem %s0, %s213
        $region36: #{tpu_custom_call.1} parent=31 // pred_fallthru
          _
        // Predicated region
        $region37: #{tpu_custom_call.1} parent=31 // pred_check
          %p215 = pneg %p61
        $region38: #{tpu_custom_call.1} parent=31 // pred_check_branch
          %217 = sbr.rel (%p215) target = $region40
        $region39: #{tpu_custom_call.1} parent=31 // pred_region
          %p218 = scmp.lt.s32.totalorder %s15, 1
          %s219 = scalar_select %p218, %s15, 1
          %s220 = scalar_lea.vmem %s1, %s219
        $region40: #{tpu_custom_call.1} parent=31 // pred_fallthru
          _
      $region32: #{tpu_custom_call.1} parent=5 // pred_fallthru
        _
      %p221 = scmp.le.s32.totalorder 1, %s15
      %p222 = scmp.lt.s32.totalorder %s15, 3
      %p223 = pnand %p221, %p222
      %p224 = pneg %p223
      // Predicated region
      $region41: #{tpu_custom_call.1} parent=5 // pred_check
        _
      $region42: #{tpu_custom_call.1} parent=5 // pred_check_branch
        %226 = sbr.rel (%p223) target = $region44
      $region43: #{tpu_custom_call.1} parent=5 // pred_region
        %s227 = ssub.s32 %s15, 1
        %p228 = scmp.lt.s32.totalorder %s20, 1
        %s229 = scalar_select %p228, %s20, 1
        %s230 = smul.addr %s229, 8
        %s231 = scalar_lea.vmem %s0, %s230
        %p232 = pneg %p41
        %p233 = pneg %p38
        %p234 = scmp.lt.s32.totalorder %s20, 1
        %s235 = scalar_select %p234, %s20, 1
        %s236 = scalar_lea.vmem %s1, %s235
        %p237 = pneg %p67
        %p238 = pneg %p64
        %p239 = pneg %p88
        %p240 = pneg %p85
        %p241 = pneg %p109
        %p242 = pneg %p106
        %p243 = pneg %p130
        %p244 = pneg %p127
        %p245 = pneg %p151
        %p246 = pneg %p148
        %p247 = pneg %p177
        %p248 = pneg %p174
        %s249 = sand.u32 %s164, 1
        %s250 = scalar_lea.sflag [#allocation3], %s249
        %s251 = sand.u32 %s164, 1
        %s252 = smul.addr %s251, 8
        %s253 = scalar_lea.vmem [#allocation2], %s252
        %p254 = scmp.lt.s32.totalorder %s20, 1
        %s255 = scalar_select %p254, %s20, 1
        %s256 = smul.addr %s255, 8
        %s257 = scalar_lea.vmem %s0, %s256
        %p258 = scmp.lt.s32.totalorder %s20, 1
        %s259 = scalar_select %p258, %s20, 1
        %s260 = scalar_lea.vmem %s1, %s259
        %v261 = vld [vmem:[%s257] sm:$0xff]
        %v262 = vld [vmem:[%s2] sm:$0xff]
        %v263 = vld [vmem:[%s2 + $0x8] sm:$0xff]
        %v264 = vld [vmem:[%s2 + $0x10] sm:$0xff]
        %v265 = vld [vmem:[%s2 + $0x18] sm:$0xff]
        %v266 = vld [vmem:[%s2 + $0x20] sm:$0xff]
        %v267 = vld [vmem:[%s2 + $0x28] sm:$0xff]
        %v268 = vld [vmem:[%s2 + $0x30] sm:$0xff]
        %v269 = vld [vmem:[%s2 + $0x38] sm:$0xff]
        %v270 = vld [vmem:[%s2 + $0x40] sm:$0xff]
        %v271 = vld [vmem:[%s2 + $0x48] sm:$0xff]
        %v272 = vld [vmem:[%s2 + $0x50] sm:$0xff]
        %v273 = vld [vmem:[%s2 + $0x58] sm:$0xff]
        %v274 = vld [vmem:[%s2 + $0x60] sm:$0xff]
        %v275 = vld [vmem:[%s2 + $0x68] sm:$0xff]
        %v276 = vld [vmem:[%s2 + $0x70] sm:$0xff]
        %v277 = vld [vmem:[%s2 + $0x78] sm:$0xff]
        %v278 = vld [vmem:[%s2 + $0x80] sm:$0xff]
        %v279 = vld [vmem:[%s2 + $0x88] sm:$0xff]
        %v280 = vld [vmem:[%s2 + $0x90] sm:$0xff]
        %v281 = vld [vmem:[%s2 + $0x98] sm:$0xff]
        %v282 = vld [vmem:[%s2 + $0xa0] sm:$0xff]
        %v283 = vld [vmem:[%s2 + $0xa8] sm:$0xff]
        %v284 = vld [vmem:[%s2 + $0xb0] sm:$0xff]
        %v285 = vld [vmem:[%s2 + $0xb8] sm:$0xff]
        %v286 = vld [vmem:[%s2 + $0xc0] sm:$0xff]
        %v287 = vld [vmem:[%s2 + $0xc8] sm:$0xff]
        %v288 = vld [vmem:[%s2 + $0xd0] sm:$0xff]
        %v289 = vld [vmem:[%s2 + $0xd8] sm:$0xff]
        %v290 = vld [vmem:[%s2 + $0xe0] sm:$0xff]
        %v291 = vld [vmem:[%s2 + $0xe8] sm:$0xff]
        %v292 = vld [vmem:[%s2 + $0xf0] sm:$0xff]
        %v293 = vld [vmem:[%s2 + $0xf8] sm:$0xff]
        %v294 = vld [vmem:[%s2 + $0x100] sm:$0xff]
        %v295 = vld [vmem:[%s2 + $0x108] sm:$0xff]
        %v296 = vld [vmem:[%s2 + $0x110] sm:$0xff]
        %v297 = vld [vmem:[%s2 + $0x118] sm:$0xff]
        %v298 = vld [vmem:[%s2 + $0x120] sm:$0xff]
        %v299 = vld [vmem:[%s2 + $0x128] sm:$0xff]
        %v300 = vld [vmem:[%s2 + $0x130] sm:$0xff]
        %v301 = vld [vmem:[%s2 + $0x138] sm:$0xff]
        %v302 = vld [vmem:[%s2 + $0x140] sm:$0xff]
        %v303 = vld [vmem:[%s2 + $0x148] sm:$0xff]
        %v304 = vld [vmem:[%s2 + $0x150] sm:$0xff]
        %v305 = vld [vmem:[%s2 + $0x158] sm:$0xff]
        %v306 = vld [vmem:[%s2 + $0x160] sm:$0xff]
        %v307 = vld [vmem:[%s2 + $0x168] sm:$0xff]
        %v308 = vld [vmem:[%s2 + $0x170] sm:$0xff]
        %v309 = vld [vmem:[%s2 + $0x178] sm:$0xff]
        %vm310 = vcmask 261120
        %v312 = vsel %vm310, %v261, 0
        %314 = vmatprep.subr.mxu0 0.0
        %315 = vmatpush1.msra.mxu0 %v262
        %316 = vmatprep.subr.mxu0 0.0
        %317 = vmatpush1.msra.mxu0 %v263
        %318 = vmatprep.subr.mxu0 0.0
        %319 = vmatpush1.msra.mxu0 %v264
        %320 = vmatprep.subr.mxu0 0.0
        %321 = vmatpush1.msra.mxu0 %v265
        %322 = vmatprep.subr.mxu0 0.0
        %323 = vmatpush1.msra.mxu0 0.0
        %324 = vmatprep.subr.mxu0 0.0
        %325 = vmatpush1.msra.mxu0 0.0
        %326 = vmatprep.subr.mxu0 0.0
        %327 = vmatpush1.msra.mxu0 0.0
        %328 = vmatprep.subr.mxu0 0.0
        %329 = vmatpush1.msra.mxu0 0.0
        %330 = vmatprep.subr.mxu0 0.0
        %331 = vmatpush1.msra.mxu0 0.0
        %332 = vmatprep.subr.mxu0 0.0
        %333 = vmatpush1.msra.mxu0 0.0
        %334 = vmatprep.subr.mxu0 0.0
        %335 = vmatpush1.msra.mxu0 0.0
        %336 = vmatprep.subr.mxu0 0.0
        %337 = vmatpush1.msra.mxu0 0.0
        %338 = vmatprep.subr.mxu0 0.0
        %339 = vmatpush1.msra.mxu0 0.0
        %340 = vmatprep.subr.mxu0 0.0
        %341 = vmatpush1.msra.mxu0 0.0
        %342 = vmatprep.subr.mxu0 0.0
        %343 = vmatpush1.msra.mxu0 0.0
        %344 = vmatprep.subr.mxu0 0.0
        %345 = vmatpush1.msra.mxu0 0.0
        %346 = vmatprep.subr.mxu0 0.0
        %347 = vmatpush1.msra.mxu0 0.0
        %348 = vmatprep.subr.mxu0 0.0
        %349 = vmatpush1.msra.mxu0 0.0
        %350 = vmatprep.subr.mxu0 0.0
        %351 = vmatpush1.msra.mxu0 0.0
        %352 = vmatprep.subr.mxu0 0.0
        %353 = vmatpush1.msra.mxu0 0.0
        %354 = vmatprep.subr.mxu0 0.0
        %355 = vmatpush1.msra.mxu0 0.0
        %356 = vmatprep.subr.mxu0 0.0
        %357 = vmatpush1.msra.mxu0 0.0
        %358 = vmatprep.subr.mxu0 0.0
        %359 = vmatpush1.msra.mxu0 0.0
        %360 = vmatprep.subr.mxu0 0.0
        %361 = vmatpush1.msra.mxu0 0.0
        %362 = vmatprep.subr.mxu0 0.0
        %363 = vmatpush1.msra.mxu0 0.0
        %364 = vmatprep.subr.mxu0 0.0
        %365 = vmatpush1.msra.mxu0 0.0
        %366 = vmatprep.subr.mxu0 0.0
        %367 = vmatpush1.msra.mxu0 0.0
        %368 = vmatprep.subr.mxu0 0.0
        %369 = vmatpush1.msra.mxu0 0.0
        %370 = vmatprep.subr.mxu0 0.0
        %371 = vmatpush1.msra.mxu0 0.0
        %372 = vmatprep.subr.mxu0 0.0
        %373 = vmatpush1.msra.mxu0 0.0
        %374 = vmatprep.subr.mxu0 0.0
        %375 = vmatpush1.msra.mxu0 0.0
        %376 = vmatprep.subr.mxu0 0.0
        %377 = vmatpush1.msra.mxu0 0.0
        %378 = vmatprep.mubr.f32.mxu0 0.0
        %379 = vmatmul.mubr.f32.gmra.mrb[0].mxu0 %v312
        %v380 = vpop.f32.mrb[0].mxu0
        %v381 = vadd.f32 0.0, %v380
        %v382 = vpop.f32.mrb[0].mxu0
        %383 = vdwg.mxu0
        %384 = vmatprep.subr.mxu0 0.0
        %385 = vmatpush1.msra.mxu0 %v266
        %386 = vmatprep.subr.mxu0 0.0
        %387 = vmatpush1.msra.mxu0 %v267
        %388 = vmatprep.subr.mxu0 0.0
        %389 = vmatpush1.msra.mxu0 %v268
        %390 = vmatprep.subr.mxu0 0.0
        %391 = vmatpush1.msra.mxu0 %v269
        %392 = vmatprep.subr.mxu0 0.0
        %393 = vmatpush1.msra.mxu0 0.0
        %394 = vmatprep.subr.mxu0 0.0
        %395 = vmatpush1.msra.mxu0 0.0
        %396 = vmatprep.subr.mxu0 0.0
        %397 = vmatpush1.msra.mxu0 0.0
        %398 = vmatprep.subr.mxu0 0.0
        %399 = vmatpush1.msra.mxu0 0.0
        %400 = vmatprep.subr.mxu0 0.0
        %401 = vmatpush1.msra.mxu0 0.0
        %402 = vmatprep.subr.mxu0 0.0
        %403 = vmatpush1.msra.mxu0 0.0
        %404 = vmatprep.subr.mxu0 0.0
        %405 = vmatpush1.msra.mxu0 0.0
        %406 = vmatprep.subr.mxu0 0.0
        %407 = vmatpush1.msra.mxu0 0.0
        %408 = vmatprep.subr.mxu0 0.0
        %409 = vmatpush1.msra.mxu0 0.0
        %410 = vmatprep.subr.mxu0 0.0
        %411 = vmatpush1.msra.mxu0 0.0
        %412 = vmatprep.subr.mxu0 0.0
        %413 = vmatpush1.msra.mxu0 0.0
        %414 = vmatprep.subr.mxu0 0.0
        %415 = vmatpush1.msra.mxu0 0.0
        %416 = vmatprep.subr.mxu0 0.0
        %417 = vmatpush1.msra.mxu0 0.0
        %418 = vmatprep.subr.mxu0 0.0
        %419 = vmatpush1.msra.mxu0 0.0
        %420 = vmatprep.subr.mxu0 0.0
        %421 = vmatpush1.msra.mxu0 0.0
        %422 = vmatprep.subr.mxu0 0.0
        %423 = vmatpush1.msra.mxu0 0.0
        %424 = vmatprep.subr.mxu0 0.0
        %425 = vmatpush1.msra.mxu0 0.0
        %426 = vmatprep.subr.mxu0 0.0
        %427 = vmatpush1.msra.mxu0 0.0
        %428 = vmatprep.subr.mxu0 0.0
        %429 = vmatpush1.msra.mxu0 0.0
        %430 = vmatprep.subr.mxu0 0.0
        %431 = vmatpush1.msra.mxu0 0.0
        %432 = vmatprep.subr.mxu0 0.0
        %433 = vmatpush1.msra.mxu0 0.0
        %434 = vmatprep.subr.mxu0 0.0
        %435 = vmatpush1.msra.mxu0 0.0
        %436 = vmatprep.subr.mxu0 0.0
        %437 = vmatpush1.msra.mxu0 0.0
        %438 = vmatprep.subr.mxu0 0.0
        %439 = vmatpush1.msra.mxu0 0.0
        %440 = vmatprep.subr.mxu0 0.0
        %441 = vmatpush1.msra.mxu0 0.0
        %442 = vmatprep.subr.mxu0 0.0
        %443 = vmatpush1.msra.mxu0 0.0
        %444 = vmatprep.subr.mxu0 0.0
        %445 = vmatpush1.msra.mxu0 0.0
        %446 = vmatprep.subr.mxu0 0.0
        %447 = vmatpush1.msra.mxu0 0.0
        %448 = vmatprep.mubr.f32.mxu0 0.0
        %449 = vmatmul.mubr.f32.gmra.mrb[0].mxu0 %v312
        %v450 = vpop.f32.mrb[0].mxu0
        %v451 = vadd.f32 0.0, %v450
        %v452 = vpop.f32.mrb[0].mxu0
        %453 = vdwg.mxu0
        %454 = vmatprep.subr.mxu0 0.0
        %455 = vmatpush1.msra.mxu0 %v270
        %456 = vmatprep.subr.mxu0 0.0
        %457 = vmatpush1.msra.mxu0 %v271
        %458 = vmatprep.subr.mxu0 0.0
        %459 = vmatpush1.msra.mxu0 %v272
        %460 = vmatprep.subr.mxu0 0.0
        %461 = vmatpush1.msra.mxu0 %v273
        %462 = vmatprep.subr.mxu0 0.0
        %463 = vmatpush1.msra.mxu0 0.0
        %464 = vmatprep.subr.mxu0 0.0
        %465 = vmatpush1.msra.mxu0 0.0
        %466 = vmatprep.subr.mxu0 0.0
        %467 = vmatpush1.msra.mxu0 0.0
        %468 = vmatprep.subr.mxu0 0.0
        %469 = vmatpush1.msra.mxu0 0.0
        %470 = vmatprep.subr.mxu0 0.0
        %471 = vmatpush1.msra.mxu0 0.0
        %472 = vmatprep.subr.mxu0 0.0
        %473 = vmatpush1.msra.mxu0 0.0
        %474 = vmatprep.subr.mxu0 0.0
        %475 = vmatpush1.msra.mxu0 0.0
        %476 = vmatprep.subr.mxu0 0.0
        %477 = vmatpush1.msra.mxu0 0.0
        %478 = vmatprep.subr.mxu0 0.0
        %479 = vmatpush1.msra.mxu0 0.0
        %480 = vmatprep.subr.mxu0 0.0
        %481 = vmatpush1.msra.mxu0 0.0
        %482 = vmatprep.subr.mxu0 0.0
        %483 = vmatpush1.msra.mxu0 0.0
        %484 = vmatprep.subr.mxu0 0.0
        %485 = vmatpush1.msra.mxu0 0.0
        %486 = vmatprep.subr.mxu0 0.0
        %487 = vmatpush1.msra.mxu0 0.0
        %488 = vmatprep.subr.mxu0 0.0
        %489 = vmatpush1.msra.mxu0 0.0
        %490 = vmatprep.subr.mxu0 0.0
        %491 = vmatpush1.msra.mxu0 0.0
        %492 = vmatprep.subr.mxu0 0.0
        %493 = vmatpush1.msra.mxu0 0.0
        %494 = vmatprep.subr.mxu0 0.0
        %495 = vmatpush1.msra.mxu0 0.0
        %496 = vmatprep.subr.mxu0 0.0
        %497 = vmatpush1.msra.mxu0 0.0
        %498 = vmatprep.subr.mxu0 0.0
        %499 = vmatpush1.msra.mxu0 0.0
        %500 = vmatprep.subr.mxu0 0.0
        %501 = vmatpush1.msra.mxu0 0.0
        %502 = vmatprep.subr.mxu0 0.0
        %503 = vmatpush1.msra.mxu0 0.0
        %504 = vmatprep.subr.mxu0 0.0
        %505 = vmatpush1.msra.mxu0 0.0
        %506 = vmatprep.subr.mxu0 0.0
        %507 = vmatpush1.msra.mxu0 0.0
        %508 = vmatprep.subr.mxu0 0.0
        %509 = vmatpush1.msra.mxu0 0.0
        %510 = vmatprep.subr.mxu0 0.0
        %511 = vmatpush1.msra.mxu0 0.0
        %512 = vmatprep.subr.mxu0 0.0
        %513 = vmatpush1.msra.mxu0 0.0
        %514 = vmatprep.subr.mxu0 0.0
        %515 = vmatpush1.msra.mxu0 0.0
        %516 = vmatprep.subr.mxu0 0.0
        %517 = vmatpush1.msra.mxu0 0.0
        %518 = vmatprep.mubr.f32.mxu0 0.0
        %519 = vmatmul.mubr.f32.gmra.mrb[0].mxu0 %v312
        %v520 = vpop.f32.mrb[0].mxu0
        %v521 = vadd.f32 0.0, %v520
        %v522 = vpop.f32.mrb[0].mxu0
        %523 = vdwg.mxu0
        %524 = vmatprep.subr.mxu0 0.0
        %525 = vmatpush1.msra.mxu0 %v274
        %526 = vmatprep.subr.mxu0 0.0
        %527 = vmatpush1.msra.mxu0 %v275
        %528 = vmatprep.subr.mxu0 0.0
        %529 = vmatpush1.msra.mxu0 %v276
        %530 = vmatprep.subr.mxu0 0.0
        %531 = vmatpush1.msra.mxu0 %v277
        %532 = vmatprep.subr.mxu0 0.0
        %533 = vmatpush1.msra.mxu0 0.0
        %534 = vmatprep.subr.mxu0 0.0
        %535 = vmatpush1.msra.mxu0 0.0
        %536 = vmatprep.subr.mxu0 0.0
        %537 = vmatpush1.msra.mxu0 0.0
        %538 = vmatprep.subr.mxu0 0.0
        %539 = vmatpush1.msra.mxu0 0.0
        %540 = vmatprep.subr.mxu0 0.0
        %541 = vmatpush1.msra.mxu0 0.0
        %542 = vmatprep.subr.mxu0 0.0
        %543 = vmatpush1.msra.mxu0 0.0
        %544 = vmatprep.subr.mxu0 0.0
        %545 = vmatpush1.msra.mxu0 0.0
        %546 = vmatprep.subr.mxu0 0.0
        %547 = vmatpush1.msra.mxu0 0.0
        %548 = vmatprep.subr.mxu0 0.0
        %549 = vmatpush1.msra.mxu0 0.0
        %550 = vmatprep.subr.mxu0 0.0
        %551 = vmatpush1.msra.mxu0 0.0
        %552 = vmatprep.subr.mxu0 0.0
        %553 = vmatpush1.msra.mxu0 0.0
        %554 = vmatprep.subr.mxu0 0.0
        %555 = vmatpush1.msra.mxu0 0.0
        %556 = vmatprep.subr.mxu0 0.0
        %557 = vmatpush1.msra.mxu0 0.0
        %558 = vmatprep.subr.mxu0 0.0
        %559 = vmatpush1.msra.mxu0 0.0
        %560 = vmatprep.subr.mxu0 0.0
        %561 = vmatpush1.msra.mxu0 0.0
        %562 = vmatprep.subr.mxu0 0.0
        %563 = vmatpush1.msra.mxu0 0.0
        %564 = vmatprep.subr.mxu0 0.0
        %565 = vmatpush1.msra.mxu0 0.0
        %566 = vmatprep.subr.mxu0 0.0
        %567 = vmatpush1.msra.mxu0 0.0
        %568 = vmatprep.subr.mxu0 0.0
        %569 = vmatpush1.msra.mxu0 0.0
        %570 = vmatprep.subr.mxu0 0.0
        %571 = vmatpush1.msra.mxu0 0.0
        %572 = vmatprep.subr.mxu0 0.0
        %573 = vmatpush1.msra.mxu0 0.0
        %574 = vmatprep.subr.mxu0 0.0
        %575 = vmatpush1.msra.mxu0 0.0
        %576 = vmatprep.subr.mxu0 0.0
        %577 = vmatpush1.msra.mxu0 0.0
        %578 = vmatprep.subr.mxu0 0.0
        %579 = vmatpush1.msra.mxu0 0.0
        %580 = vmatprep.subr.mxu0 0.0
        %581 = vmatpush1.msra.mxu0 0.0
        %582 = vmatprep.subr.mxu0 0.0
        %583 = vmatpush1.msra.mxu0 0.0
        %584 = vmatprep.subr.mxu0 0.0
        %585 = vmatpush1.msra.mxu0 0.0
        %586 = vmatprep.subr.mxu0 0.0
        %587 = vmatpush1.msra.mxu0 0.0
        %588 = vmatprep.mubr.f32.mxu0 0.0
        %589 = vmatmul.mubr.f32.gmra.mrb[0].mxu0 %v312
        %v590 = vpop.f32.mrb[0].mxu0
        %v591 = vadd.f32 0.0, %v590
        %v592 = vpop.f32.mrb[0].mxu0
        %593 = vdwg.mxu0
        %594 = vmatprep.subr.mxu0 0.0
        %595 = vmatpush1.msra.mxu0 %v278
        %596 = vmatprep.subr.mxu0 0.0
        %597 = vmatpush1.msra.mxu0 %v279
        %598 = vmatprep.subr.mxu0 0.0
        %599 = vmatpush1.msra.mxu0 %v280
        %600 = vmatprep.subr.mxu0 0.0
        %601 = vmatpush1.msra.mxu0 %v281
        %602 = vmatprep.subr.mxu0 0.0
        %603 = vmatpush1.msra.mxu0 0.0
        %604 = vmatprep.subr.mxu0 0.0
        %605 = vmatpush1.msra.mxu0 0.0
        %606 = vmatprep.subr.mxu0 0.0
        %607 = vmatpush1.msra.mxu0 0.0
        %608 = vmatprep.subr.mxu0 0.0
        %609 = vmatpush1.msra.mxu0 0.0
        %610 = vmatprep.subr.mxu0 0.0
        %611 = vmatpush1.msra.mxu0 0.0
        %612 = vmatprep.subr.mxu0 0.0
        %613 = vmatpush1.msra.mxu0 0.0
        %614 = vmatprep.subr.mxu0 0.0
        %615 = vmatpush1.msra.mxu0 0.0
        %616 = vmatprep.subr.mxu0 0.0
        %617 = vmatpush1.msra.mxu0 0.0
        %618 = vmatprep.subr.mxu0 0.0
        %619 = vmatpush1.msra.mxu0 0.0
        %620 = vmatprep.subr.mxu0 0.0
        %621 = vmatpush1.msra.mxu0 0.0
        %622 = vmatprep.subr.mxu0 0.0
        %623 = vmatpush1.msra.mxu0 0.0
        %624 = vmatprep.subr.mxu0 0.0
        %625 = vmatpush1.msra.mxu0 0.0
        %626 = vmatprep.subr.mxu0 0.0
        %627 = vmatpush1.msra.mxu0 0.0
        %628 = vmatprep.subr.mxu0 0.0
        %629 = vmatpush1.msra.mxu0 0.0
        %630 = vmatprep.subr.mxu0 0.0
        %631 = vmatpush1.msra.mxu0 0.0
        %632 = vmatprep.subr.mxu0 0.0
        %633 = vmatpush1.msra.mxu0 0.0
        %634 = vmatprep.subr.mxu0 0.0
        %635 = vmatpush1.msra.mxu0 0.0
        %636 = vmatprep.subr.mxu0 0.0
        %637 = vmatpush1.msra.mxu0 0.0
        %638 = vmatprep.subr.mxu0 0.0
        %639 = vmatpush1.msra.mxu0 0.0
        %640 = vmatprep.subr.mxu0 0.0
        %641 = vmatpush1.msra.mxu0 0.0
        %642 = vmatprep.subr.mxu0 0.0
        %643 = vmatpush1.msra.mxu0 0.0
        %644 = vmatprep.subr.mxu0 0.0
        %645 = vmatpush1.msra.mxu0 0.0
        %646 = vmatprep.subr.mxu0 0.0
        %647 = vmatpush1.msra.mxu0 0.0
        %648 = vmatprep.subr.mxu0 0.0
        %649 = vmatpush1.msra.mxu0 0.0
        %650 = vmatprep.subr.mxu0 0.0
        %651 = vmatpush1.msra.mxu0 0.0
        %652 = vmatprep.subr.mxu0 0.0
        %653 = vmatpush1.msra.mxu0 0.0
        %654 = vmatprep.subr.mxu0 0.0
        %655 = vmatpush1.msra.mxu0 0.0
        %656 = vmatprep.subr.mxu0 0.0
        %657 = vmatpush1.msra.mxu0 0.0
        %658 = vmatprep.mubr.f32.mxu0 0.0
        %659 = vmatmul.mubr.f32.gmra.mrb[0].mxu0 %v312
        %v660 = vpop.f32.mrb[0].mxu0
        %v661 = vadd.f32 0.0, %v660
        %v662 = vpop.f32.mrb[0].mxu0
        %663 = vdwg.mxu0
        %664 = vmatprep.subr.mxu0 0.0
        %665 = vmatpush1.msra.mxu0 %v282
        %666 = vmatprep.subr.mxu0 0.0
        %667 = vmatpush1.msra.mxu0 %v283
        %668 = vmatprep.subr.mxu0 0.0
        %669 = vmatpush1.msra.mxu0 %v284
        %670 = vmatprep.subr.mxu0 0.0
        %671 = vmatpush1.msra.mxu0 %v285
        %672 = vmatprep.subr.mxu0 0.0
        %673 = vmatpush1.msra.mxu0 0.0
        %674 = vmatprep.subr.mxu0 0.0
        %675 = vmatpush1.msra.mxu0 0.0
        %676 = vmatprep.subr.mxu0 0.0
        %677 = vmatpush1.msra.mxu0 0.0
        %678 = vmatprep.subr.mxu0 0.0
        %679 = vmatpush1.msra.mxu0 0.0
        %680 = vmatprep.subr.mxu0 0.0
        %681 = vmatpush1.msra.mxu0 0.0
        %682 = vmatprep.subr.mxu0 0.0
        %683 = vmatpush1.msra.mxu0 0.0
        %684 = vmatprep.subr.mxu0 0.0
        %685 = vmatpush1.msra.mxu0 0.0
        %686 = vmatprep.subr.mxu0 0.0
        %687 = vmatpush1.msra.mxu0 0.0
        %688 = vmatprep.subr.mxu0 0.0
        %689 = vmatpush1.msra.mxu0 0.0
        %690 = vmatprep.subr.mxu0 0.0
        %691 = vmatpush1.msra.mxu0 0.0
        %692 = vmatprep.subr.mxu0 0.0
        %693 = vmatpush1.msra.mxu0 0.0
        %694 = vmatprep.subr.mxu0 0.0
        %695 = vmatpush1.msra.mxu0 0.0
        %696 = vmatprep.subr.mxu0 0.0
        %697 = vmatpush1.msra.mxu0 0.0
        %698 = vmatprep.subr.mxu0 0.0
        %699 = vmatpush1.msra.mxu0 0.0
        %700 = vmatprep.subr.mxu0 0.0
        %701 = vmatpush1.msra.mxu0 0.0
        %702 = vmatprep.subr.mxu0 0.0
        %703 = vmatpush1.msra.mxu0 0.0
        %704 = vmatprep.subr.mxu0 0.0
        %705 = vmatpush1.msra.mxu0 0.0
        %706 = vmatprep.subr.mxu0 0.0
        %707 = vmatpush1.msra.mxu0 0.0
        %708 = vmatprep.subr.mxu0 0.0
        %709 = vmatpush1.msra.mxu0 0.0
        %710 = vmatprep.subr.mxu0 0.0
        %711 = vmatpush1.msra.mxu0 0.0
        %712 = vmatprep.subr.mxu0 0.0
        %713 = vmatpush1.msra.mxu0 0.0
        %714 = vmatprep.subr.mxu0 0.0
        %715 = vmatpush1.msra.mxu0 0.0
        %716 = vmatprep.subr.mxu0 0.0
        %717 = vmatpush1.msra.mxu0 0.0
        %718 = vmatprep.subr.mxu0 0.0
        %719 = vmatpush1.msra.mxu0 0.0
        %720 = vmatprep.subr.mxu0 0.0
        %721 = vmatpush1.msra.mxu0 0.0
        %722 = vmatprep.subr.mxu0 0.0
        %723 = vmatpush1.msra.mxu0 0.0
        %724 = vmatprep.subr.mxu0 0.0
        %725 = vmatpush1.msra.mxu0 0.0
        %726 = vmatprep.subr.mxu0 0.0
        %727 = vmatpush1.msra.mxu0 0.0
        %728 = vmatprep.mubr.f32.mxu0 0.0
        %729 = vmatmul.mubr.f32.gmra.mrb[0].mxu0 %v312
        %v730 = vpop.f32.mrb[0].mxu0
        %v731 = vadd.f32 0.0, %v730
        %v732 = vpop.f32.mrb[0].mxu0
        %733 = vdwg.mxu0
        %734 = vmatprep.subr.mxu0 0.0
        %735 = vmatpush1.msra.mxu0 %v286
        %736 = vmatprep.subr.mxu0 0.0
        %737 = vmatpush1.msra.mxu0 %v287
        %738 = vmatprep.subr.mxu0 0.0
        %739 = vmatpush1.msra.mxu0 %v288
        %740 = vmatprep.subr.mxu0 0.0
        %741 = vmatpush1.msra.mxu0 %v289
        %742 = vmatprep.subr.mxu0 0.0
        %743 = vmatpush1.msra.mxu0 0.0
        %744 = vmatprep.subr.mxu0 0.0
        %745 = vmatpush1.msra.mxu0 0.0
        %746 = vmatprep.subr.mxu0 0.0
        %747 = vmatpush1.msra.mxu0 0.0
        %748 = vmatprep.subr.mxu0 0.0
        %749 = vmatpush1.msra.mxu0 0.0
        %750 = vmatprep.subr.mxu0 0.0
        %751 = vmatpush1.msra.mxu0 0.0
        %752 = vmatprep.subr.mxu0 0.0
        %753 = vmatpush1.msra.mxu0 0.0
        %754 = vmatprep.subr.mxu0 0.0
        %755 = vmatpush1.msra.mxu0 0.0
        %756 = vmatprep.subr.mxu0 0.0
        %757 = vmatpush1.msra.mxu0 0.0
        %758 = vmatprep.subr.mxu0 0.0
        %759 = vmatpush1.msra.mxu0 0.0
        %760 = vmatprep.subr.mxu0 0.0
        %761 = vmatpush1.msra.mxu0 0.0
        %762 = vmatprep.subr.mxu0 0.0
        %763 = vmatpush1.msra.mxu0 0.0
        %764 = vmatprep.subr.mxu0 0.0
        %765 = vmatpush1.msra.mxu0 0.0
        %766 = vmatprep.subr.mxu0 0.0
        %767 = vmatpush1.msra.mxu0 0.0
        %768 = vmatprep.subr.mxu0 0.0
        %769 = vmatpush1.msra.mxu0 0.0
        %770 = vmatprep.subr.mxu0 0.0
        %771 = vmatpush1.msra.mxu0 0.0
        %772 = vmatprep.subr.mxu0 0.0
        %773 = vmatpush1.msra.mxu0 0.0
        %774 = vmatprep.subr.mxu0 0.0
        %775 = vmatpush1.msra.mxu0 0.0
        %776 = vmatprep.subr.mxu0 0.0
        %777 = vmatpush1.msra.mxu0 0.0
        %778 = vmatprep.subr.mxu0 0.0
        %779 = vmatpush1.msra.mxu0 0.0
        %780 = vmatprep.subr.mxu0 0.0
        %781 = vmatpush1.msra.mxu0 0.0
        %782 = vmatprep.subr.mxu0 0.0
        %783 = vmatpush1.msra.mxu0 0.0
        %784 = vmatprep.subr.mxu0 0.0
        %785 = vmatpush1.msra.mxu0 0.0
        %786 = vmatprep.subr.mxu0 0.0
        %787 = vmatpush1.msra.mxu0 0.0
        %788 = vmatprep.subr.mxu0 0.0
        %789 = vmatpush1.msra.mxu0 0.0
        %790 = vmatprep.subr.mxu0 0.0
        %791 = vmatpush1.msra.mxu0 0.0
        %792 = vmatprep.subr.mxu0 0.0
        %793 = vmatpush1.msra.mxu0 0.0
        %794 = vmatprep.subr.mxu0 0.0
        %795 = vmatpush1.msra.mxu0 0.0
        %796 = vmatprep.subr.mxu0 0.0
        %797 = vmatpush1.msra.mxu0 0.0
        %798 = vmatprep.mubr.f32.mxu0 0.0
        %799 = vmatmul.mubr.f32.gmra.mrb[0].mxu0 %v312
        %v800 = vpop.f32.mrb[0].mxu0
        %v801 = vadd.f32 0.0, %v800
        %v802 = vpop.f32.mrb[0].mxu0
        %803 = vdwg.mxu0
        %804 = vmatprep.subr.mxu0 0.0
        %805 = vmatpush1.msra.mxu0 %v290
        %806 = vmatprep.subr.mxu0 0.0
        %807 = vmatpush1.msra.mxu0 %v291
        %808 = vmatprep.subr.mxu0 0.0
        %809 = vmatpush1.msra.mxu0 %v292
        %810 = vmatprep.subr.mxu0 0.0
        %811 = vmatpush1.msra.mxu0 %v293
        %812 = vmatprep.subr.mxu0 0.0
        %813 = vmatpush1.msra.mxu0 0.0
        %814 = vmatprep.subr.mxu0 0.0
        %815 = vmatpush1.msra.mxu0 0.0
        %816 = vmatprep.subr.mxu0 0.0
        %817 = vmatpush1.msra.mxu0 0.0
        %818 = vmatprep.subr.mxu0 0.0
        %819 = vmatpush1.msra.mxu0 0.0
        %820 = vmatprep.subr.mxu0 0.0
        %821 = vmatpush1.msra.mxu0 0.0
        %822 = vmatprep.subr.mxu0 0.0
        %823 = vmatpush1.msra.mxu0 0.0
        %824 = vmatprep.subr.mxu0 0.0
        %825 = vmatpush1.msra.mxu0 0.0
        %826 = vmatprep.subr.mxu0 0.0
        %827 = vmatpush1.msra.mxu0 0.0
        %828 = vmatprep.subr.mxu0 0.0
        %829 = vmatpush1.msra.mxu0 0.0
        %830 = vmatprep.subr.mxu0 0.0
        %831 = vmatpush1.msra.mxu0 0.0
        %832 = vmatprep.subr.mxu0 0.0
        %833 = vmatpush1.msra.mxu0 0.0
        %834 = vmatprep.subr.mxu0 0.0
        %835 = vmatpush1.msra.mxu0 0.0
        %836 = vmatprep.subr.mxu0 0.0
        %837 = vmatpush1.msra.mxu0 0.0
        %838 = vmatprep.subr.mxu0 0.0
        %839 = vmatpush1.msra.mxu0 0.0
        %840 = vmatprep.subr.mxu0 0.0
        %841 = vmatpush1.msra.mxu0 0.0
        %842 = vmatprep.subr.mxu0 0.0
        %843 = vmatpush1.msra.mxu0 0.0
        %844 = vmatprep.subr.mxu0 0.0
        %845 = vmatpush1.msra.mxu0 0.0
        %846 = vmatprep.subr.mxu0 0.0
        %847 = vmatpush1.msra.mxu0 0.0
        %848 = vmatprep.subr.mxu0 0.0
        %849 = vmatpush1.msra.mxu0 0.0
        %850 = vmatprep.subr.mxu0 0.0
        %851 = vmatpush1.msra.mxu0 0.0
        %852 = vmatprep.subr.mxu0 0.0
        %853 = vmatpush1.msra.mxu0 0.0
        %854 = vmatprep.subr.mxu0 0.0
        %855 = vmatpush1.msra.mxu0 0.0
        %856 = vmatprep.subr.mxu0 0.0
        %857 = vmatpush1.msra.mxu0 0.0
        %858 = vmatprep.subr.mxu0 0.0
        %859 = vmatpush1.msra.mxu0 0.0
        %860 = vmatprep.subr.mxu0 0.0
        %861 = vmatpush1.msra.mxu0 0.0
        %862 = vmatprep.subr.mxu0 0.0
        %863 = vmatpush1.msra.mxu0 0.0
        %864 = vmatprep.subr.mxu0 0.0
        %865 = vmatpush1.msra.mxu0 0.0
        %866 = vmatprep.subr.mxu0 0.0
        %867 = vmatpush1.msra.mxu0 0.0
        %868 = vmatprep.mubr.f32.mxu0 0.0
        %869 = vmatmul.mubr.f32.gmra.mrb[0].mxu0 %v312
        %v870 = vpop.f32.mrb[0].mxu0
        %v871 = vadd.f32 0.0, %v870
        %v872 = vpop.f32.mrb[0].mxu0
        %873 = vdwg.mxu0
        %874 = vmatprep.subr.mxu0 0.0
        %875 = vmatpush1.msra.mxu0 %v294
        %876 = vmatprep.subr.mxu0 0.0
        %877 = vmatpush1.msra.mxu0 %v295
        %878 = vmatprep.subr.mxu0 0.0
        %879 = vmatpush1.msra.mxu0 %v296
        %880 = vmatprep.subr.mxu0 0.0
        %881 = vmatpush1.msra.mxu0 %v297
        %882 = vmatprep.subr.mxu0 0.0
        %883 = vmatpush1.msra.mxu0 0.0
        %884 = vmatprep.subr.mxu0 0.0
        %885 = vmatpush1.msra.mxu0 0.0
        %886 = vmatprep.subr.mxu0 0.0
        %887 = vmatpush1.msra.mxu0 0.0
        %888 = vmatprep.subr.mxu0 0.0
        %889 = vmatpush1.msra.mxu0 0.0
        %890 = vmatprep.subr.mxu0 0.0
        %891 = vmatpush1.msra.mxu0 0.0
        %892 = vmatprep.subr.mxu0 0.0
        %893 = vmatpush1.msra.mxu0 0.0
        %894 = vmatprep.subr.mxu0 0.0
        %895 = vmatpush1.msra.mxu0 0.0
        %896 = vmatprep.subr.mxu0 0.0
        %897 = vmatpush1.msra.mxu0 0.0
        %898 = vmatprep.subr.mxu0 0.0
        %899 = vmatpush1.msra.mxu0 0.0
        %900 = vmatprep.subr.mxu0 0.0
        %901 = vmatpush1.msra.mxu0 0.0
        %902 = vmatprep.subr.mxu0 0.0
        %903 = vmatpush1.msra.mxu0 0.0
        %904 = vmatprep.subr.mxu0 0.0
        %905 = vmatpush1.msra.mxu0 0.0
        %906 = vmatprep.subr.mxu0 0.0
        %907 = vmatpush1.msra.mxu0 0.0
        %908 = vmatprep.subr.mxu0 0.0
        %909 = vmatpush1.msra.mxu0 0.0
        %910 = vmatprep.subr.mxu0 0.0
        %911 = vmatpush1.msra.mxu0 0.0
        %912 = vmatprep.subr.mxu0 0.0
        %913 = vmatpush1.msra.mxu0 0.0
        %914 = vmatprep.subr.mxu0 0.0
        %915 = vmatpush1.msra.mxu0 0.0
        %916 = vmatprep.subr.mxu0 0.0
        %917 = vmatpush1.msra.mxu0 0.0
        %918 = vmatprep.subr.mxu0 0.0
        %919 = vmatpush1.msra.mxu0 0.0
        %920 = vmatprep.subr.mxu0 0.0
        %921 = vmatpush1.msra.mxu0 0.0
        %922 = vmatprep.subr.mxu0 0.0
        %923 = vmatpush1.msra.mxu0 0.0
        %924 = vmatprep.subr.mxu0 0.0
        %925 = vmatpush1.msra.mxu0 0.0
        %926 = vmatprep.subr.mxu0 0.0
        %927 = vmatpush1.msra.mxu0 0.0
        %928 = vmatprep.subr.mxu0 0.0
        %929 = vmatpush1.msra.mxu0 0.0
        %930 = vmatprep.subr.mxu0 0.0
        %931 = vmatpush1.msra.mxu0 0.0
        %932 = vmatprep.subr.mxu0 0.0
        %933 = vmatpush1.msra.mxu0 0.0
        %934 = vmatprep.subr.mxu0 0.0
        %935 = vmatpush1.msra.mxu0 0.0
        %936 = vmatprep.subr.mxu0 0.0
        %937 = vmatpush1.msra.mxu0 0.0
        %938 = vmatprep.mubr.f32.mxu0 0.0
        %939 = vmatmul.mubr.f32.gmra.mrb[0].mxu0 %v312
        %v940 = vpop.f32.mrb[0].mxu0
        %v941 = vadd.f32 0.0, %v940
        %v942 = vpop.f32.mrb[0].mxu0
        %943 = vdwg.mxu0
        %944 = vmatprep.subr.mxu0 0.0
        %945 = vmatpush1.msra.mxu0 %v298
        %946 = vmatprep.subr.mxu0 0.0
        %947 = vmatpush1.msra.mxu0 %v299
        %948 = vmatprep.subr.mxu0 0.0
        %949 = vmatpush1.msra.mxu0 %v300
        %950 = vmatprep.subr.mxu0 0.0
        %951 = vmatpush1.msra.mxu0 %v301
        %952 = vmatprep.subr.mxu0 0.0
        %953 = vmatpush1.msra.mxu0 0.0
        %954 = vmatprep.subr.mxu0 0.0
        %955 = vmatpush1.msra.mxu0 0.0
        %956 = vmatprep.subr.mxu0 0.0
        %957 = vmatpush1.msra.mxu0 0.0
        %958 = vmatprep.subr.mxu0 0.0
        %959 = vmatpush1.msra.mxu0 0.0
        %960 = vmatprep.subr.mxu0 0.0
        %961 = vmatpush1.msra.mxu0 0.0
        %962 = vmatprep.subr.mxu0 0.0
        %963 = vmatpush1.msra.mxu0 0.0
        %964 = vmatprep.subr.mxu0 0.0
        %965 = vmatpush1.msra.mxu0 0.0
        %966 = vmatprep.subr.mxu0 0.0
        %967 = vmatpush1.msra.mxu0 0.0
        %968 = vmatprep.subr.mxu0 0.0
        %969 = vmatpush1.msra.mxu0 0.0
        %970 = vmatprep.subr.mxu0 0.0
        %971 = vmatpush1.msra.mxu0 0.0
        %972 = vmatprep.subr.mxu0 0.0
        %973 = vmatpush1.msra.mxu0 0.0
        %974 = vmatprep.subr.mxu0 0.0
        %975 = vmatpush1.msra.mxu0 0.0
        %976 = vmatprep.subr.mxu0 0.0
        %977 = vmatpush1.msra.mxu0 0.0
        %978 = vmatprep.subr.mxu0 0.0
        %979 = vmatpush1.msra.mxu0 0.0
        %980 = vmatprep.subr.mxu0 0.0
        %981 = vmatpush1.msra.mxu0 0.0
        %982 = vmatprep.subr.mxu0 0.0
        %983 = vmatpush1.msra.mxu0 0.0
        %984 = vmatprep.subr.mxu0 0.0
        %985 = vmatpush1.msra.mxu0 0.0
        %986 = vmatprep.subr.mxu0 0.0
        %987 = vmatpush1.msra.mxu0 0.0
        %988 = vmatprep.subr.mxu0 0.0
        %989 = vmatpush1.msra.mxu0 0.0
        %990 = vmatprep.subr.mxu0 0.0
        %991 = vmatpush1.msra.mxu0 0.0
        %992 = vmatprep.subr.mxu0 0.0
        %993 = vmatpush1.msra.mxu0 0.0
        %994 = vmatprep.subr.mxu0 0.0
        %995 = vmatpush1.msra.mxu0 0.0
        %996 = vmatprep.subr.mxu0 0.0
        %997 = vmatpush1.msra.mxu0 0.0
        %998 = vmatprep.subr.mxu0 0.0
        %999 = vmatpush1.msra.mxu0 0.0
        %1000 = vmatprep.subr.mxu0 0.0
        %1001 = vmatpush1.msra.mxu0 0.0
        %1002 = vmatprep.subr.mxu0 0.0
        %1003 = vmatpush1.msra.mxu0 0.0
        %1004 = vmatprep.subr.mxu0 0.0
        %1005 = vmatpush1.msra.mxu0 0.0
        %1006 = vmatprep.subr.mxu0 0.0
        %1007 = vmatpush1.msra.mxu0 0.0
        %1008 = vmatprep.mubr.f32.mxu0 0.0
        %1009 = vmatmul.mubr.f32.gmra.mrb[0].mxu0 %v312
        %v1010 = vpop.f32.mrb[0].mxu0
        %v1011 = vadd.f32 0.0, %v1010
        %v1012 = vpop.f32.mrb[0].mxu0
        %1013 = vdwg.mxu0
        %1014 = vmatprep.subr.mxu0 0.0
        %1015 = vmatpush1.msra.mxu0 %v302
        %1016 = vmatprep.subr.mxu0 0.0
        %1017 = vmatpush1.msra.mxu0 %v303
        %1018 = vmatprep.subr.mxu0 0.0
        %1019 = vmatpush1.msra.mxu0 %v304
        %1020 = vmatprep.subr.mxu0 0.0
        %1021 = vmatpush1.msra.mxu0 %v305
        %1022 = vmatprep.subr.mxu0 0.0
        %1023 = vmatpush1.msra.mxu0 0.0
        %1024 = vmatprep.subr.mxu0 0.0
        %1025 = vmatpush1.msra.mxu0 0.0
        %1026 = vmatprep.subr.mxu0 0.0
        %1027 = vmatpush1.msra.mxu0 0.0
        %1028 = vmatprep.subr.mxu0 0.0
        %1029 = vmatpush1.msra.mxu0 0.0
        %1030 = vmatprep.subr.mxu0 0.0
        %1031 = vmatpush1.msra.mxu0 0.0
        %1032 = vmatprep.subr.mxu0 0.0
        %1033 = vmatpush1.msra.mxu0 0.0
        %1034 = vmatprep.subr.mxu0 0.0
        %1035 = vmatpush1.msra.mxu0 0.0
        %1036 = vmatprep.subr.mxu0 0.0
        %1037 = vmatpush1.msra.mxu0 0.0
        %1038 = vmatprep.subr.mxu0 0.0
        %1039 = vmatpush1.msra.mxu0 0.0
        %1040 = vmatprep.subr.mxu0 0.0
        %1041 = vmatpush1.msra.mxu0 0.0
        %1042 = vmatprep.subr.mxu0 0.0
        %1043 = vmatpush1.msra.mxu0 0.0
        %1044 = vmatprep.subr.mxu0 0.0
        %1045 = vmatpush1.msra.mxu0 0.0
        %1046 = vmatprep.subr.mxu0 0.0
        %1047 = vmatpush1.msra.mxu0 0.0
        %1048 = vmatprep.subr.mxu0 0.0
        %1049 = vmatpush1.msra.mxu0 0.0
        %1050 = vmatprep.subr.mxu0 0.0
        %1051 = vmatpush1.msra.mxu0 0.0
        %1052 = vmatprep.subr.mxu0 0.0
        %1053 = vmatpush1.msra.mxu0 0.0
        %1054 = vmatprep.subr.mxu0 0.0
        %1055 = vmatpush1.msra.mxu0 0.0
        %1056 = vmatprep.subr.mxu0 0.0
        %1057 = vmatpush1.msra.mxu0 0.0
        %1058 = vmatprep.subr.mxu0 0.0
        %1059 = vmatpush1.msra.mxu0 0.0
        %1060 = vmatprep.subr.mxu0 0.0
        %1061 = vmatpush1.msra.mxu0 0.0
        %1062 = vmatprep.subr.mxu0 0.0
        %1063 = vmatpush1.msra.mxu0 0.0
        %1064 = vmatprep.subr.mxu0 0.0
        %1065 = vmatpush1.msra.mxu0 0.0
        %1066 = vmatprep.subr.mxu0 0.0
        %1067 = vmatpush1.msra.mxu0 0.0
        %1068 = vmatprep.subr.mxu0 0.0
        %1069 = vmatpush1.msra.mxu0 0.0
        %1070 = vmatprep.subr.mxu0 0.0
        %1071 = vmatpush1.msra.mxu0 0.0
        %1072 = vmatprep.subr.mxu0 0.0
        %1073 = vmatpush1.msra.mxu0 0.0
        %1074 = vmatprep.subr.mxu0 0.0
        %1075 = vmatpush1.msra.mxu0 0.0
        %1076 = vmatprep.subr.mxu0 0.0
        %1077 = vmatpush1.msra.mxu0 0.0
        %1078 = vmatprep.mubr.f32.mxu0 0.0
        %1079 = vmatmul.mubr.f32.gmra.mrb[0].mxu0 %v312
        %v1080 = vpop.f32.mrb[0].mxu0
        %v1081 = vadd.f32 0.0, %v1080
        %v1082 = vpop.f32.mrb[0].mxu0
        %1083 = vdwg.mxu0
        %1084 = vmatprep.subr.mxu0 0.0
        %1085 = vmatpush1.msra.mxu0 %v306
        %1086 = vmatprep.subr.mxu0 0.0
        %1087 = vmatpush1.msra.mxu0 %v307
        %1088 = vmatprep.subr.mxu0 0.0
        %1089 = vmatpush1.msra.mxu0 %v308
        %1090 = vmatprep.subr.mxu0 0.0
        %1091 = vmatpush1.msra.mxu0 %v309
        %1092 = vmatprep.subr.mxu0 0.0
        %1093 = vmatpush1.msra.mxu0 0.0
        %1094 = vmatprep.subr.mxu0 0.0
        %1095 = vmatpush1.msra.mxu0 0.0
        %1096 = vmatprep.subr.mxu0 0.0
        %1097 = vmatpush1.msra.mxu0 0.0
        %1098 = vmatprep.subr.mxu0 0.0
        %1099 = vmatpush1.msra.mxu0 0.0
        %1100 = vmatprep.subr.mxu0 0.0
        %1101 = vmatpush1.msra.mxu0 0.0
        %1102 = vmatprep.subr.mxu0 0.0
        %1103 = vmatpush1.msra.mxu0 0.0
        %1104 = vmatprep.subr.mxu0 0.0
        %1105 = vmatpush1.msra.mxu0 0.0
        %1106 = vmatprep.subr.mxu0 0.0
        %1107 = vmatpush1.msra.mxu0 0.0
        %1108 = vmatprep.subr.mxu0 0.0
        %1109 = vmatpush1.msra.mxu0 0.0
        %1110 = vmatprep.subr.mxu0 0.0
        %1111 = vmatpush1.msra.mxu0 0.0
        %1112 = vmatprep.subr.mxu0 0.0
        %1113 = vmatpush1.msra.mxu0 0.0
        %1114 = vmatprep.subr.mxu0 0.0
        %1115 = vmatpush1.msra.mxu0 0.0
        %1116 = vmatprep.subr.mxu0 0.0
        %1117 = vmatpush1.msra.mxu0 0.0
        %1118 = vmatprep.subr.mxu0 0.0
        %1119 = vmatpush1.msra.mxu0 0.0
        %1120 = vmatprep.subr.mxu0 0.0
        %1121 = vmatpush1.msra.mxu0 0.0
        %1122 = vmatprep.subr.mxu0 0.0
        %1123 = vmatpush1.msra.mxu0 0.0
        %1124 = vmatprep.subr.mxu0 0.0
        %1125 = vmatpush1.msra.mxu0 0.0
        %1126 = vmatprep.subr.mxu0 0.0
        %1127 = vmatpush1.msra.mxu0 0.0
        %1128 = vmatprep.subr.mxu0 0.0
        %1129 = vmatpush1.msra.mxu0 0.0
        %1130 = vmatprep.subr.mxu0 0.0
        %1131 = vmatpush1.msra.mxu0 0.0
        %1132 = vmatprep.subr.mxu0 0.0
        %1133 = vmatpush1.msra.mxu0 0.0
        %1134 = vmatprep.subr.mxu0 0.0
        %1135 = vmatpush1.msra.mxu0 0.0
        %1136 = vmatprep.subr.mxu0 0.0
        %1137 = vmatpush1.msra.mxu0 0.0
        %1138 = vmatprep.subr.mxu0 0.0
        %1139 = vmatpush1.msra.mxu0 0.0
        %1140 = vmatprep.subr.mxu0 0.0
        %1141 = vmatpush1.msra.mxu0 0.0
        %1142 = vmatprep.subr.mxu0 0.0
        %1143 = vmatpush1.msra.mxu0 0.0
        %1144 = vmatprep.subr.mxu0 0.0
        %1145 = vmatpush1.msra.mxu0 0.0
        %1146 = vmatprep.subr.mxu0 0.0
        %1147 = vmatpush1.msra.mxu0 0.0
        %1148 = vmatprep.mubr.f32.mxu0 0.0
        %1149 = vmatmul.mubr.f32.gmra.mrb[0].mxu0 %v312
        %v1150 = vpop.f32.mrb[0].mxu0
        %v1151 = vadd.f32 0.0, %v1150
        %v1152 = vpop.f32.mrb[0].mxu0
        %1153 = vdwg.mxu0
        %v1154 = vld [vmem:[%s3] sm:$0x1]
        %v1155 = vld [vmem:[%s3 + $0x1] sm:$0x1]
        %v1156 = vld [vmem:[%s3 + $0x2] sm:$0x1]
        %v1157 = vld [vmem:[%s3 + $0x3] sm:$0x1]
        %v1162 = vlaneseq
        %v1163 = vshrl.u32 %v1162, 7
        %v1164 = vsub.s32 0, %v1163
        %v1165 = vrot.slane %v1154, %v1164
        %v1166 = vlaneseq
        %v1167 = vshrl.u32 %v1166, 7
        %v1168 = vsub.s32 0, %v1167
        %v1169 = vrot.slane %v1155, %v1168
        %v1170 = vlaneseq
        %v1171 = vshrl.u32 %v1170, 7
        %v1172 = vsub.s32 0, %v1171
        %v1173 = vrot.slane %v1156, %v1172
        %v1174 = vlaneseq
        %v1175 = vshrl.u32 %v1174, 7
        %v1176 = vsub.s32 0, %v1175
        %v1177 = vrot.slane %v1157, %v1176
        %v1182 = vadd.f32 %v381, %v1165
        %v1183 = vadd.f32 %v451, %v1169
        %v1184 = vadd.f32 %v521, %v1173
        %v1185 = vadd.f32 %v591, %v1177
        %v1186 = vld [vmem:[%s260] sm:$0x1]
        %v1188 = vlaneseq
        %v1189 = vshrl.u32 %v1188, 7
        %v1190 = vsub.s32 0, %v1189
        %v1191 = vrot.slane %v1186, %v1190
        %vm1193 = vcmask 64512
        %v1195 = vsel %vm1193, %v1182, 0
        %v1198 = vsel %vm1193, %v661, 0
        %1200 = vmatprep.subr.mxu0 0.0
        %1201 = vmatpush1.xpose.msra.mxu0 %v1198
        %1202 = vmatprep.subr.mxu0 0.0
        %1203 = vmatpush1.xpose.msra.mxu0 0.0
        %1204 = vmatprep.subr.mxu0 0.0
        %1205 = vmatpush1.xpose.msra.mxu0 0.0
        %1206 = vmatprep.subr.mxu0 0.0
        %1207 = vmatpush1.xpose.msra.mxu0 0.0
        %1208 = vmatprep.subr.mxu0 0.0
        %1209 = vmatpush1.xpose.msra.mxu0 0.0
        %1210 = vmatprep.subr.mxu0 0.0
        %1211 = vmatpush1.xpose.msra.mxu0 0.0
        %1212 = vmatprep.subr.mxu0 0.0
        %1213 = vmatpush1.xpose.msra.mxu0 0.0
        %1214 = vmatprep.subr.mxu0 0.0
        %1215 = vmatpush1.xpose.msra.mxu0 0.0
        %1216 = vmatprep.subr.mxu0 0.0
        %1217 = vmatpush1.xpose.msra.mxu0 0.0
        %1218 = vmatprep.subr.mxu0 0.0
        %1219 = vmatpush1.xpose.msra.mxu0 0.0
        %1220 = vmatprep.subr.mxu0 0.0
        %1221 = vmatpush1.xpose.msra.mxu0 0.0
        %1222 = vmatprep.subr.mxu0 0.0
        %1223 = vmatpush1.xpose.msra.mxu0 0.0
        %1224 = vmatprep.subr.mxu0 0.0
        %1225 = vmatpush1.xpose.msra.mxu0 0.0
        %1226 = vmatprep.subr.mxu0 0.0
        %1227 = vmatpush1.xpose.msra.mxu0 0.0
        %1228 = vmatprep.subr.mxu0 0.0
        %1229 = vmatpush1.xpose.msra.mxu0 0.0
        %1230 = vmatprep.subr.mxu0 0.0
        %1231 = vmatpush1.xpose.msra.mxu0 0.0
        %1232 = vmatprep.subr.mxu0 0.0
        %1233 = vmatpush1.xpose.msra.mxu0 0.0
        %1234 = vmatprep.subr.mxu0 0.0
        %1235 = vmatpush1.xpose.msra.mxu0 0.0
        %1236 = vmatprep.subr.mxu0 0.0
        %1237 = vmatpush1.xpose.msra.mxu0 0.0
        %1238 = vmatprep.subr.mxu0 0.0
        %1239 = vmatpush1.xpose.msra.mxu0 0.0
        %1240 = vmatprep.subr.mxu0 0.0
        %1241 = vmatpush1.xpose.msra.mxu0 0.0
        %1242 = vmatprep.subr.mxu0 0.0
        %1243 = vmatpush1.xpose.msra.mxu0 0.0
        %1244 = vmatprep.subr.mxu0 0.0
        %1245 = vmatpush1.xpose.msra.mxu0 0.0
        %1246 = vmatprep.subr.mxu0 0.0
        %1247 = vmatpush1.xpose.msra.mxu0 0.0
        %1248 = vmatprep.subr.mxu0 0.0
        %1249 = vmatpush1.xpose.msra.mxu0 0.0
        %1250 = vmatprep.subr.mxu0 0.0
        %1251 = vmatpush1.xpose.msra.mxu0 0.0
        %1252 = vmatprep.subr.mxu0 0.0
        %1253 = vmatpush1.xpose.msra.mxu0 0.0
        %1254 = vmatprep.subr.mxu0 0.0
        %1255 = vmatpush1.xpose.msra.mxu0 0.0
        %1256 = vmatprep.subr.mxu0 0.0
        %1257 = vmatpush1.xpose.msra.mxu0 0.0
        %1258 = vmatprep.subr.mxu0 0.0
        %1259 = vmatpush1.xpose.msra.mxu0 0.0
        %1260 = vmatprep.subr.mxu0 0.0
        %1261 = vmatpush1.xpose.msra.mxu0 0.0
        %1262 = vmatprep.subr.mxu0 0.0
        %1263 = vmatpush1.xpose.msra.mxu0 0.0
        %1264 = vmatprep.mubr.f32.mxu0 0.0
        %1265 = vmatmul.mubr.f32.gmra.mrb[0].mxu0 %v1195
        %v1266 = vpop.f32.mrb[0].mxu0
        %v1267 = vadd.f32 %v1191, %v1266
        %v1268 = vpop.f32.mrb[0].mxu0
        %1269 = vdwg.mxu0
        %v1271 = vsel %vm1193, %v1183, 0
        %v1274 = vsel %vm1193, %v731, 0
        %1276 = vmatprep.subr.mxu0 0.0
        %1277 = vmatpush1.xpose.msra.mxu0 %v1274
        %1278 = vmatprep.subr.mxu0 0.0
        %1279 = vmatpush1.xpose.msra.mxu0 0.0
        %1280 = vmatprep.subr.mxu0 0.0
        %1281 = vmatpush1.xpose.msra.mxu0 0.0
        %1282 = vmatprep.subr.mxu0 0.0
        %1283 = vmatpush1.xpose.msra.mxu0 0.0
        %1284 = vmatprep.subr.mxu0 0.0
        %1285 = vmatpush1.xpose.msra.mxu0 0.0
        %1286 = vmatprep.subr.mxu0 0.0
        %1287 = vmatpush1.xpose.msra.mxu0 0.0
        %1288 = vmatprep.subr.mxu0 0.0
        %1289 = vmatpush1.xpose.msra.mxu0 0.0
        %1290 = vmatprep.subr.mxu0 0.0
        %1291 = vmatpush1.xpose.msra.mxu0 0.0
        %1292 = vmatprep.subr.mxu0 0.0
        %1293 = vmatpush1.xpose.msra.mxu0 0.0
        %1294 = vmatprep.subr.mxu0 0.0
        %1295 = vmatpush1.xpose.msra.mxu0 0.0
        %1296 = vmatprep.subr.mxu0 0.0
        %1297 = vmatpush1.xpose.msra.mxu0 0.0
        %1298 = vmatprep.subr.mxu0 0.0
        %1299 = vmatpush1.xpose.msra.mxu0 0.0
        %1300 = vmatprep.subr.mxu0 0.0
        %1301 = vmatpush1.xpose.msra.mxu0 0.0
        %1302 = vmatprep.subr.mxu0 0.0
        %1303 = vmatpush1.xpose.msra.mxu0 0.0
        %1304 = vmatprep.subr.mxu0 0.0
        %1305 = vmatpush1.xpose.msra.mxu0 0.0
        %1306 = vmatprep.subr.mxu0 0.0
        %1307 = vmatpush1.xpose.msra.mxu0 0.0
        %1308 = vmatprep.subr.mxu0 0.0
        %1309 = vmatpush1.xpose.msra.mxu0 0.0
        %1310 = vmatprep.subr.mxu0 0.0
        %1311 = vmatpush1.xpose.msra.mxu0 0.0
        %1312 = vmatprep.subr.mxu0 0.0
        %1313 = vmatpush1.xpose.msra.mxu0 0.0
        %1314 = vmatprep.subr.mxu0 0.0
        %1315 = vmatpush1.xpose.msra.mxu0 0.0
        %1316 = vmatprep.subr.mxu0 0.0
        %1317 = vmatpush1.xpose.msra.mxu0 0.0
        %1318 = vmatprep.subr.mxu0 0.0
        %1319 = vmatpush1.xpose.msra.mxu0 0.0
        %1320 = vmatprep.subr.mxu0 0.0
        %1321 = vmatpush1.xpose.msra.mxu0 0.0
        %1322 = vmatprep.subr.mxu0 0.0
        %1323 = vmatpush1.xpose.msra.mxu0 0.0
        %1324 = vmatprep.subr.mxu0 0.0
        %1325 = vmatpush1.xpose.msra.mxu0 0.0
        %1326 = vmatprep.subr.mxu0 0.0
        %1327 = vmatpush1.xpose.msra.mxu0 0.0
        %1328 = vmatprep.subr.mxu0 0.0
        %1329 = vmatpush1.xpose.msra.mxu0 0.0
        %1330 = vmatprep.subr.mxu0 0.0
        %1331 = vmatpush1.xpose.msra.mxu0 0.0
        %1332 = vmatprep.subr.mxu0 0.0
        %1333 = vmatpush1.xpose.msra.mxu0 0.0
        %1334 = vmatprep.subr.mxu0 0.0
        %1335 = vmatpush1.xpose.msra.mxu0 0.0
        %1336 = vmatprep.subr.mxu0 0.0
        %1337 = vmatpush1.xpose.msra.mxu0 0.0
        %1338 = vmatprep.subr.mxu0 0.0
        %1339 = vmatpush1.xpose.msra.mxu0 0.0
        %1340 = vmatprep.mubr.f32.mxu0 0.0
        %1341 = vmatmul.mubr.f32.gmra.mrb[0].mxu0 %v1271
        %v1342 = vpop.f32.mrb[0].mxu0
        %v1343 = vadd.f32 %v1191, %v1342
        %v1344 = vpop.f32.mrb[0].mxu0
        %1345 = vdwg.mxu0
        %v1347 = vsel %vm1193, %v1184, 0
        %v1350 = vsel %vm1193, %v801, 0
        %1352 = vmatprep.subr.mxu0 0.0
        %1353 = vmatpush1.xpose.msra.mxu0 %v1350
        %1354 = vmatprep.subr.mxu0 0.0
        %1355 = vmatpush1.xpose.msra.mxu0 0.0
        %1356 = vmatprep.subr.mxu0 0.0
        %1357 = vmatpush1.xpose.msra.mxu0 0.0
        %1358 = vmatprep.subr.mxu0 0.0
        %1359 = vmatpush1.xpose.msra.mxu0 0.0
        %1360 = vmatprep.subr.mxu0 0.0
        %1361 = vmatpush1.xpose.msra.mxu0 0.0
        %1362 = vmatprep.subr.mxu0 0.0
        %1363 = vmatpush1.xpose.msra.mxu0 0.0
        %1364 = vmatprep.subr.mxu0 0.0
        %1365 = vmatpush1.xpose.msra.mxu0 0.0
        %1366 = vmatprep.subr.mxu0 0.0
        %1367 = vmatpush1.xpose.msra.mxu0 0.0
        %1368 = vmatprep.subr.mxu0 0.0
        %1369 = vmatpush1.xpose.msra.mxu0 0.0
        %1370 = vmatprep.subr.mxu0 0.0
        %1371 = vmatpush1.xpose.msra.mxu0 0.0
        %1372 = vmatprep.subr.mxu0 0.0
        %1373 = vmatpush1.xpose.msra.mxu0 0.0
        %1374 = vmatprep.subr.mxu0 0.0
        %1375 = vmatpush1.xpose.msra.mxu0 0.0
        %1376 = vmatprep.subr.mxu0 0.0
        %1377 = vmatpush1.xpose.msra.mxu0 0.0
        %1378 = vmatprep.subr.mxu0 0.0
        %1379 = vmatpush1.xpose.msra.mxu0 0.0
        %1380 = vmatprep.subr.mxu0 0.0
        %1381 = vmatpush1.xpose.msra.mxu0 0.0
        %1382 = vmatprep.subr.mxu0 0.0
        %1383 = vmatpush1.xpose.msra.mxu0 0.0
        %1384 = vmatprep.subr.mxu0 0.0
        %1385 = vmatpush1.xpose.msra.mxu0 0.0
        %1386 = vmatprep.subr.mxu0 0.0
        %1387 = vmatpush1.xpose.msra.mxu0 0.0
        %1388 = vmatprep.subr.mxu0 0.0
        %1389 = vmatpush1.xpose.msra.mxu0 0.0
        %1390 = vmatprep.subr.mxu0 0.0
        %1391 = vmatpush1.xpose.msra.mxu0 0.0
        %1392 = vmatprep.subr.mxu0 0.0
        %1393 = vmatpush1.xpose.msra.mxu0 0.0
        %1394 = vmatprep.subr.mxu0 0.0
        %1395 = vmatpush1.xpose.msra.mxu0 0.0
        %1396 = vmatprep.subr.mxu0 0.0
        %1397 = vmatpush1.xpose.msra.mxu0 0.0
        %1398 = vmatprep.subr.mxu0 0.0
        %1399 = vmatpush1.xpose.msra.mxu0 0.0
        %1400 = vmatprep.subr.mxu0 0.0
        %1401 = vmatpush1.xpose.msra.mxu0 0.0
        %1402 = vmatprep.subr.mxu0 0.0
        %1403 = vmatpush1.xpose.msra.mxu0 0.0
        %1404 = vmatprep.subr.mxu0 0.0
        %1405 = vmatpush1.xpose.msra.mxu0 0.0
        %1406 = vmatprep.subr.mxu0 0.0
        %1407 = vmatpush1.xpose.msra.mxu0 0.0
        %1408 = vmatprep.subr.mxu0 0.0
        %1409 = vmatpush1.xpose.msra.mxu0 0.0
        %1410 = vmatprep.subr.mxu0 0.0
        %1411 = vmatpush1.xpose.msra.mxu0 0.0
        %1412 = vmatprep.subr.mxu0 0.0
        %1413 = vmatpush1.xpose.msra.mxu0 0.0
        %1414 = vmatprep.subr.mxu0 0.0
        %1415 = vmatpush1.xpose.msra.mxu0 0.0
        %1416 = vmatprep.mubr.f32.mxu0 0.0
        %1417 = vmatmul.mubr.f32.gmra.mrb[0].mxu0 %v1347
        %v1418 = vpop.f32.mrb[0].mxu0
        %v1419 = vadd.f32 %v1191, %v1418
        %v1420 = vpop.f32.mrb[0].mxu0
        %1421 = vdwg.mxu0
        %v1423 = vsel %vm1193, %v1185, 0
        %v1426 = vsel %vm1193, %v871, 0
        %1428 = vmatprep.subr.mxu0 0.0
        %1429 = vmatpush1.xpose.msra.mxu0 %v1426
        %1430 = vmatprep.subr.mxu0 0.0
        %1431 = vmatpush1.xpose.msra.mxu0 0.0
        %1432 = vmatprep.subr.mxu0 0.0
        %1433 = vmatpush1.xpose.msra.mxu0 0.0
        %1434 = vmatprep.subr.mxu0 0.0
        %1435 = vmatpush1.xpose.msra.mxu0 0.0
        %1436 = vmatprep.subr.mxu0 0.0
        %1437 = vmatpush1.xpose.msra.mxu0 0.0
        %1438 = vmatprep.subr.mxu0 0.0
        %1439 = vmatpush1.xpose.msra.mxu0 0.0
        %1440 = vmatprep.subr.mxu0 0.0
        %1441 = vmatpush1.xpose.msra.mxu0 0.0
        %1442 = vmatprep.subr.mxu0 0.0
        %1443 = vmatpush1.xpose.msra.mxu0 0.0
        %1444 = vmatprep.subr.mxu0 0.0
        %1445 = vmatpush1.xpose.msra.mxu0 0.0
        %1446 = vmatprep.subr.mxu0 0.0
        %1447 = vmatpush1.xpose.msra.mxu0 0.0
        %1448 = vmatprep.subr.mxu0 0.0
        %1449 = vmatpush1.xpose.msra.mxu0 0.0
        %1450 = vmatprep.subr.mxu0 0.0
        %1451 = vmatpush1.xpose.msra.mxu0 0.0
        %1452 = vmatprep.subr.mxu0 0.0
        %1453 = vmatpush1.xpose.msra.mxu0 0.0
        %1454 = vmatprep.subr.mxu0 0.0
        %1455 = vmatpush1.xpose.msra.mxu0 0.0
        %1456 = vmatprep.subr.mxu0 0.0
        %1457 = vmatpush1.xpose.msra.mxu0 0.0
        %1458 = vmatprep.subr.mxu0 0.0
        %1459 = vmatpush1.xpose.msra.mxu0 0.0
        %1460 = vmatprep.subr.mxu0 0.0
        %1461 = vmatpush1.xpose.msra.mxu0 0.0
        %1462 = vmatprep.subr.mxu0 0.0
        %1463 = vmatpush1.xpose.msra.mxu0 0.0
        %1464 = vmatprep.subr.mxu0 0.0
        %1465 = vmatpush1.xpose.msra.mxu0 0.0
        %1466 = vmatprep.subr.mxu0 0.0
        %1467 = vmatpush1.xpose.msra.mxu0 0.0
        %1468 = vmatprep.subr.mxu0 0.0
        %1469 = vmatpush1.xpose.msra.mxu0 0.0
        %1470 = vmatprep.subr.mxu0 0.0
        %1471 = vmatpush1.xpose.msra.mxu0 0.0
        %1472 = vmatprep.subr.mxu0 0.0
        %1473 = vmatpush1.xpose.msra.mxu0 0.0
        %1474 = vmatprep.subr.mxu0 0.0
        %1475 = vmatpush1.xpose.msra.mxu0 0.0
        %1476 = vmatprep.subr.mxu0 0.0
        %1477 = vmatpush1.xpose.msra.mxu0 0.0
        %1478 = vmatprep.subr.mxu0 0.0
        %1479 = vmatpush1.xpose.msra.mxu0 0.0
        %1480 = vmatprep.subr.mxu0 0.0
        %1481 = vmatpush1.xpose.msra.mxu0 0.0
        %1482 = vmatprep.subr.mxu0 0.0
        %1483 = vmatpush1.xpose.msra.mxu0 0.0
        %1484 = vmatprep.subr.mxu0 0.0
        %1485 = vmatpush1.xpose.msra.mxu0 0.0
        %1486 = vmatprep.subr.mxu0 0.0
        %1487 = vmatpush1.xpose.msra.mxu0 0.0
        %1488 = vmatprep.subr.mxu0 0.0
        %1489 = vmatpush1.xpose.msra.mxu0 0.0
        %1490 = vmatprep.subr.mxu0 0.0
        %1491 = vmatpush1.xpose.msra.mxu0 0.0
        %1492 = vmatprep.mubr.f32.mxu0 0.0
        %1493 = vmatmul.mubr.f32.gmra.mrb[0].mxu0 %v1423
        %v1494 = vpop.f32.mrb[0].mxu0
        %v1495 = vadd.f32 %v1191, %v1494
        %v1496 = vpop.f32.mrb[0].mxu0
        %1497 = vdwg.mxu0
        %v1498 = vsel %vm1193, %v1267, -inf
        %1499 = vmax.xlane.f32.xlu0 %v1498
        %v1500 = vpop.xlane.xlu0 %1499
        %v1501 = vsel %vm1193, %v1343, -inf
        %1502 = vmax.xlane.f32.xlu0 %v1501
        %v1503 = vpop.xlane.xlu0 %1502
        %v1504 = vsel %vm1193, %v1419, -inf
        %1505 = vmax.xlane.f32.xlu0 %v1504
        %v1506 = vpop.xlane.xlu0 %1505
        %v1507 = vsel %vm1193, %v1495, -inf
        %1508 = vmax.xlane.f32.xlu0 %v1507
        %v1509 = vpop.xlane.xlu0 %1508
        %v1510 = vsub.f32 %v1267, %v1500
        %v1511 = vsub.f32 %v1343, %v1503
        %v1512 = vsub.f32 %v1419, %v1506
        %v1513 = vsub.f32 %v1495, %v1509
        %v1514 = vmul.f32 %v1510, 1.442695
        %v1515 = vpow.pop %v1514
        %v1516 = vmul.f32 %v1511, 1.442695
        %v1517 = vpow.pop %v1516
        %v1518 = vmul.f32 %v1512, 1.442695
        %v1519 = vpow.pop %v1518
        %v1520 = vmul.f32 %v1513, 1.442695
        %v1521 = vpow.pop %v1520
        %v1522 = vsel %vm1193, %v1515, 0.0
        %1523 = vadd.xlane.f32.xlu0 %v1522
        %v1524 = vpop.xlane.xlu0 %1523
        %v1525 = vsel %vm1193, %v1517, 0.0
        %1526 = vadd.xlane.f32.xlu0 %v1525
        %v1527 = vpop.xlane.xlu0 %1526
        %v1528 = vsel %vm1193, %v1519, 0.0
        %1529 = vadd.xlane.f32.xlu0 %v1528
        %v1530 = vpop.xlane.xlu0 %1529
        %v1531 = vsel %vm1193, %v1521, 0.0
        %1532 = vadd.xlane.f32.xlu0 %v1531
        %v1533 = vpop.xlane.xlu0 %1532
        %v1534 = vrcp.pop %v1524
        %v1535 = vrcp.pop %v1527
        %v1536 = vrcp.pop %v1530
        %v1537 = vrcp.pop %v1533
        %v1538 = vmul.f32 %v1515, %v1534
        %v1539 = vmul.f32 %v1517, %v1535
        %v1540 = vmul.f32 %v1519, %v1536
        %v1541 = vmul.f32 %v1521, %v1537
        %v1543 = vsel %vm1193, %v1538, 0
        %1545 = vmatprep.subr.mxu0 0.0
        %1546 = vmatpush1.msra.mxu0 %v941
        %1547 = vmatprep.subr.mxu0 0.0
        %1548 = vmatpush1.msra.mxu0 0.0
        %1549 = vmatprep.subr.mxu0 0.0
        %1550 = vmatpush1.msra.mxu0 0.0
        %1551 = vmatprep.subr.mxu0 0.0
        %1552 = vmatpush1.msra.mxu0 0.0
        %1553 = vmatprep.subr.mxu0 0.0
        %1554 = vmatpush1.msra.mxu0 0.0
        %1555 = vmatprep.subr.mxu0 0.0
        %1556 = vmatpush1.msra.mxu0 0.0
        %1557 = vmatprep.subr.mxu0 0.0
        %1558 = vmatpush1.msra.mxu0 0.0
        %1559 = vmatprep.subr.mxu0 0.0
        %1560 = vmatpush1.msra.mxu0 0.0
        %1561 = vmatprep.subr.mxu0 0.0
        %1562 = vmatpush1.msra.mxu0 0.0
        %1563 = vmatprep.subr.mxu0 0.0
        %1564 = vmatpush1.msra.mxu0 0.0
        %1565 = vmatprep.subr.mxu0 0.0
        %1566 = vmatpush1.msra.mxu0 0.0
        %1567 = vmatprep.subr.mxu0 0.0
        %1568 = vmatpush1.msra.mxu0 0.0
        %1569 = vmatprep.subr.mxu0 0.0
        %1570 = vmatpush1.msra.mxu0 0.0
        %1571 = vmatprep.subr.mxu0 0.0
        %1572 = vmatpush1.msra.mxu0 0.0
        %1573 = vmatprep.subr.mxu0 0.0
        %1574 = vmatpush1.msra.mxu0 0.0
        %1575 = vmatprep.subr.mxu0 0.0
        %1576 = vmatpush1.msra.mxu0 0.0
        %1577 = vmatprep.subr.mxu0 0.0
        %1578 = vmatpush1.msra.mxu0 0.0
        %1579 = vmatprep.subr.mxu0 0.0
        %1580 = vmatpush1.msra.mxu0 0.0
        %1581 = vmatprep.subr.mxu0 0.0
        %1582 = vmatpush1.msra.mxu0 0.0
        %1583 = vmatprep.subr.mxu0 0.0
        %1584 = vmatpush1.msra.mxu0 0.0
        %1585 = vmatprep.subr.mxu0 0.0
        %1586 = vmatpush1.msra.mxu0 0.0
        %1587 = vmatprep.subr.mxu0 0.0
        %1588 = vmatpush1.msra.mxu0 0.0
        %1589 = vmatprep.subr.mxu0 0.0
        %1590 = vmatpush1.msra.mxu0 0.0
        %1591 = vmatprep.subr.mxu0 0.0
        %1592 = vmatpush1.msra.mxu0 0.0
        %1593 = vmatprep.subr.mxu0 0.0
        %1594 = vmatpush1.msra.mxu0 0.0
        %1595 = vmatprep.subr.mxu0 0.0
        %1596 = vmatpush1.msra.mxu0 0.0
        %1597 = vmatprep.subr.mxu0 0.0
        %1598 = vmatpush1.msra.mxu0 0.0
        %1599 = vmatprep.subr.mxu0 0.0
        %1600 = vmatpush1.msra.mxu0 0.0
        %1601 = vmatprep.subr.mxu0 0.0
        %1602 = vmatpush1.msra.mxu0 0.0
        %1603 = vmatprep.subr.mxu0 0.0
        %1604 = vmatpush1.msra.mxu0 0.0
        %1605 = vmatprep.subr.mxu0 0.0
        %1606 = vmatpush1.msra.mxu0 0.0
        %1607 = vmatprep.subr.mxu0 0.0
        %1608 = vmatpush1.msra.mxu0 0.0
        %1609 = vmatprep.mubr.f32.mxu0 0.0
        %1610 = vmatmul.mubr.f32.gmra.mrb[0].mxu0 %v1543
        %v1611 = vpop.f32.mrb[0].mxu0
        %v1612 = vadd.f32 0.0, %v1611
        %v1613 = vpop.f32.mrb[0].mxu0
        %1614 = vdwg.mxu0
        %v1616 = vsel %vm1193, %v1539, 0
        %1618 = vmatprep.subr.mxu0 0.0
        %1619 = vmatpush1.msra.mxu0 %v1011
        %1620 = vmatprep.subr.mxu0 0.0
        %1621 = vmatpush1.msra.mxu0 0.0
        %1622 = vmatprep.subr.mxu0 0.0
        %1623 = vmatpush1.msra.mxu0 0.0
        %1624 = vmatprep.subr.mxu0 0.0
        %1625 = vmatpush1.msra.mxu0 0.0
        %1626 = vmatprep.subr.mxu0 0.0
        %1627 = vmatpush1.msra.mxu0 0.0
        %1628 = vmatprep.subr.mxu0 0.0
        %1629 = vmatpush1.msra.mxu0 0.0
        %1630 = vmatprep.subr.mxu0 0.0
        %1631 = vmatpush1.msra.mxu0 0.0
        %1632 = vmatprep.subr.mxu0 0.0
        %1633 = vmatpush1.msra.mxu0 0.0
        %1634 = vmatprep.subr.mxu0 0.0
        %1635 = vmatpush1.msra.mxu0 0.0
        %1636 = vmatprep.subr.mxu0 0.0
        %1637 = vmatpush1.msra.mxu0 0.0
        %1638 = vmatprep.subr.mxu0 0.0
        %1639 = vmatpush1.msra.mxu0 0.0
        %1640 = vmatprep.subr.mxu0 0.0
        %1641 = vmatpush1.msra.mxu0 0.0
        %1642 = vmatprep.subr.mxu0 0.0
        %1643 = vmatpush1.msra.mxu0 0.0
        %1644 = vmatprep.subr.mxu0 0.0
        %1645 = vmatpush1.msra.mxu0 0.0
        %1646 = vmatprep.subr.mxu0 0.0
        %1647 = vmatpush1.msra.mxu0 0.0
        %1648 = vmatprep.subr.mxu0 0.0
        %1649 = vmatpush1.msra.mxu0 0.0
        %1650 = vmatprep.subr.mxu0 0.0
        %1651 = vmatpush1.msra.mxu0 0.0
        %1652 = vmatprep.subr.mxu0 0.0
        %1653 = vmatpush1.msra.mxu0 0.0
        %1654 = vmatprep.subr.mxu0 0.0
        %1655 = vmatpush1.msra.mxu0 0.0
        %1656 = vmatprep.subr.mxu0 0.0
        %1657 = vmatpush1.msra.mxu0 0.0
        %1658 = vmatprep.subr.mxu0 0.0
        %1659 = vmatpush1.msra.mxu0 0.0
        %1660 = vmatprep.subr.mxu0 0.0
        %1661 = vmatpush1.msra.mxu0 0.0
        %1662 = vmatprep.subr.mxu0 0.0
        %1663 = vmatpush1.msra.mxu0 0.0
        %1664 = vmatprep.subr.mxu0 0.0
        %1665 = vmatpush1.msra.mxu0 0.0
        %1666 = vmatprep.subr.mxu0 0.0
        %1667 = vmatpush1.msra.mxu0 0.0
        %1668 = vmatprep.subr.mxu0 0.0
        %1669 = vmatpush1.msra.mxu0 0.0
        %1670 = vmatprep.subr.mxu0 0.0
        %1671 = vmatpush1.msra.mxu0 0.0
        %1672 = vmatprep.subr.mxu0 0.0
        %1673 = vmatpush1.msra.mxu0 0.0
        %1674 = vmatprep.subr.mxu0 0.0
        %1675 = vmatpush1.msra.mxu0 0.0
        %1676 = vmatprep.subr.mxu0 0.0
        %1677 = vmatpush1.msra.mxu0 0.0
        %1678 = vmatprep.subr.mxu0 0.0
        %1679 = vmatpush1.msra.mxu0 0.0
        %1680 = vmatprep.subr.mxu0 0.0
        %1681 = vmatpush1.msra.mxu0 0.0
        %1682 = vmatprep.mubr.f32.mxu0 0.0
        %1683 = vmatmul.mubr.f32.gmra.mrb[0].mxu0 %v1616
        %v1684 = vpop.f32.mrb[0].mxu0
        %v1685 = vadd.f32 0.0, %v1684
        %v1686 = vpop.f32.mrb[0].mxu0
        %1687 = vdwg.mxu0
        %v1689 = vsel %vm1193, %v1540, 0
        %1691 = vmatprep.subr.mxu0 0.0
        %1692 = vmatpush1.msra.mxu0 %v1081
        %1693 = vmatprep.subr.mxu0 0.0
        %1694 = vmatpush1.msra.mxu0 0.0
        %1695 = vmatprep.subr.mxu0 0.0
        %1696 = vmatpush1.msra.mxu0 0.0
        %1697 = vmatprep.subr.mxu0 0.0
        %1698 = vmatpush1.msra.mxu0 0.0
        %1699 = vmatprep.subr.mxu0 0.0
        %1700 = vmatpush1.msra.mxu0 0.0
        %1701 = vmatprep.subr.mxu0 0.0
        %1702 = vmatpush1.msra.mxu0 0.0
        %1703 = vmatprep.subr.mxu0 0.0
        %1704 = vmatpush1.msra.mxu0 0.0
        %1705 = vmatprep.subr.mxu0 0.0
        %1706 = vmatpush1.msra.mxu0 0.0
        %1707 = vmatprep.subr.mxu0 0.0
        %1708 = vmatpush1.msra.mxu0 0.0
        %1709 = vmatprep.subr.mxu0 0.0
        %1710 = vmatpush1.msra.mxu0 0.0
        %1711 = vmatprep.subr.mxu0 0.0
        %1712 = vmatpush1.msra.mxu0 0.0
        %1713 = vmatprep.subr.mxu0 0.0
        %1714 = vmatpush1.msra.mxu0 0.0
        %1715 = vmatprep.subr.mxu0 0.0
        %1716 = vmatpush1.msra.mxu0 0.0
        %1717 = vmatprep.subr.mxu0 0.0
        %1718 = vmatpush1.msra.mxu0 0.0
        %1719 = vmatprep.subr.mxu0 0.0
        %1720 = vmatpush1.msra.mxu0 0.0
        %1721 = vmatprep.subr.mxu0 0.0
        %1722 = vmatpush1.msra.mxu0 0.0
        %1723 = vmatprep.subr.mxu0 0.0
        %1724 = vmatpush1.msra.mxu0 0.0
        %1725 = vmatprep.subr.mxu0 0.0
        %1726 = vmatpush1.msra.mxu0 0.0
        %1727 = vmatprep.subr.mxu0 0.0
        %1728 = vmatpush1.msra.mxu0 0.0
        %1729 = vmatprep.subr.mxu0 0.0
        %1730 = vmatpush1.msra.mxu0 0.0
        %1731 = vmatprep.subr.mxu0 0.0
        %1732 = vmatpush1.msra.mxu0 0.0
        %1733 = vmatprep.subr.mxu0 0.0
        %1734 = vmatpush1.msra.mxu0 0.0
        %1735 = vmatprep.subr.mxu0 0.0
        %1736 = vmatpush1.msra.mxu0 0.0
        %1737 = vmatprep.subr.mxu0 0.0
        %1738 = vmatpush1.msra.mxu0 0.0
        %1739 = vmatprep.subr.mxu0 0.0
        %1740 = vmatpush1.msra.mxu0 0.0
        %1741 = vmatprep.subr.mxu0 0.0
        %1742 = vmatpush1.msra.mxu0 0.0
        %1743 = vmatprep.subr.mxu0 0.0
        %1744 = vmatpush1.msra.mxu0 0.0
        %1745 = vmatprep.subr.mxu0 0.0
        %1746 = vmatpush1.msra.mxu0 0.0
        %1747 = vmatprep.subr.mxu0 0.0
        %1748 = vmatpush1.msra.mxu0 0.0
        %1749 = vmatprep.subr.mxu0 0.0
        %1750 = vmatpush1.msra.mxu0 0.0
        %1751 = vmatprep.subr.mxu0 0.0
        %1752 = vmatpush1.msra.mxu0 0.0
        %1753 = vmatprep.subr.mxu0 0.0
        %1754 = vmatpush1.msra.mxu0 0.0
        %1755 = vmatprep.mubr.f32.mxu0 0.0
        %1756 = vmatmul.mubr.f32.gmra.mrb[0].mxu0 %v1689
        %v1757 = vpop.f32.mrb[0].mxu0
        %v1758 = vadd.f32 0.0, %v1757
        %v1759 = vpop.f32.mrb[0].mxu0
        %1760 = vdwg.mxu0
        %v1762 = vsel %vm1193, %v1541, 0
        %1764 = vmatprep.subr.mxu0 0.0
        %1765 = vmatpush1.msra.mxu0 %v1151
        %1766 = vmatprep.subr.mxu0 0.0
        %1767 = vmatpush1.msra.mxu0 0.0
        %1768 = vmatprep.subr.mxu0 0.0
        %1769 = vmatpush1.msra.mxu0 0.0
        %1770 = vmatprep.subr.mxu0 0.0
        %1771 = vmatpush1.msra.mxu0 0.0
        %1772 = vmatprep.subr.mxu0 0.0
        %1773 = vmatpush1.msra.mxu0 0.0
        %1774 = vmatprep.subr.mxu0 0.0
        %1775 = vmatpush1.msra.mxu0 0.0
        %1776 = vmatprep.subr.mxu0 0.0
        %1777 = vmatpush1.msra.mxu0 0.0
        %1778 = vmatprep.subr.mxu0 0.0
        %1779 = vmatpush1.msra.mxu0 0.0
        %1780 = vmatprep.subr.mxu0 0.0
        %1781 = vmatpush1.msra.mxu0 0.0
        %1782 = vmatprep.subr.mxu0 0.0
        %1783 = vmatpush1.msra.mxu0 0.0
        %1784 = vmatprep.subr.mxu0 0.0
        %1785 = vmatpush1.msra.mxu0 0.0
        %1786 = vmatprep.subr.mxu0 0.0
        %1787 = vmatpush1.msra.mxu0 0.0
        %1788 = vmatprep.subr.mxu0 0.0
        %1789 = vmatpush1.msra.mxu0 0.0
        %1790 = vmatprep.subr.mxu0 0.0
        %1791 = vmatpush1.msra.mxu0 0.0
        %1792 = vmatprep.subr.mxu0 0.0
        %1793 = vmatpush1.msra.mxu0 0.0
        %1794 = vmatprep.subr.mxu0 0.0
        %1795 = vmatpush1.msra.mxu0 0.0
        %1796 = vmatprep.subr.mxu0 0.0
        %1797 = vmatpush1.msra.mxu0 0.0
        %1798 = vmatprep.subr.mxu0 0.0
        %1799 = vmatpush1.msra.mxu0 0.0
        %1800 = vmatprep.subr.mxu0 0.0
        %1801 = vmatpush1.msra.mxu0 0.0
        %1802 = vmatprep.subr.mxu0 0.0
        %1803 = vmatpush1.msra.mxu0 0.0
        %1804 = vmatprep.subr.mxu0 0.0
        %1805 = vmatpush1.msra.mxu0 0.0
        %1806 = vmatprep.subr.mxu0 0.0
        %1807 = vmatpush1.msra.mxu0 0.0
        %1808 = vmatprep.subr.mxu0 0.0
        %1809 = vmatpush1.msra.mxu0 0.0
        %1810 = vmatprep.subr.mxu0 0.0
        %1811 = vmatpush1.msra.mxu0 0.0
        %1812 = vmatprep.subr.mxu0 0.0
        %1813 = vmatpush1.msra.mxu0 0.0
        %1814 = vmatprep.subr.mxu0 0.0
        %1815 = vmatpush1.msra.mxu0 0.0
        %1816 = vmatprep.subr.mxu0 0.0
        %1817 = vmatpush1.msra.mxu0 0.0
        %1818 = vmatprep.subr.mxu0 0.0
        %1819 = vmatpush1.msra.mxu0 0.0
        %1820 = vmatprep.subr.mxu0 0.0
        %1821 = vmatpush1.msra.mxu0 0.0
        %1822 = vmatprep.subr.mxu0 0.0
        %1823 = vmatpush1.msra.mxu0 0.0
        %1824 = vmatprep.subr.mxu0 0.0
        %1825 = vmatpush1.msra.mxu0 0.0
        %1826 = vmatprep.subr.mxu0 0.0
        %1827 = vmatpush1.msra.mxu0 0.0
        %1828 = vmatprep.mubr.f32.mxu0 0.0
        %1829 = vmatmul.mubr.f32.gmra.mrb[0].mxu0 %v1762
        %v1830 = vpop.f32.mrb[0].mxu0
        %v1831 = vadd.f32 0.0, %v1830
        %v1832 = vpop.f32.mrb[0].mxu0
        %1833 = vdwg.mxu0
        %v1834 = vld [vmem:[%s4] sm:$0xff]
        %v1835 = vld [vmem:[%s4 + $0x8] sm:$0xff]
        %v1836 = vld [vmem:[%s4 + $0x10] sm:$0xff]
        %v1837 = vld [vmem:[%s4 + $0x18] sm:$0xff]
        %v1839 = vsel %vm1193, %v1612, 0
        %1841 = vmatprep.subr.mxu0 0.0
        %1842 = vmatpush1.msra.mxu0 %v1834
        %1843 = vmatprep.subr.mxu0 0.0
        %1844 = vmatpush1.msra.mxu0 0.0
        %1845 = vmatprep.subr.mxu0 0.0
        %1846 = vmatpush1.msra.mxu0 0.0
        %1847 = vmatprep.subr.mxu0 0.0
        %1848 = vmatpush1.msra.mxu0 0.0
        %1849 = vmatprep.subr.mxu0 0.0
        %1850 = vmatpush1.msra.mxu0 0.0
        %1851 = vmatprep.subr.mxu0 0.0
        %1852 = vmatpush1.msra.mxu0 0.0
        %1853 = vmatprep.subr.mxu0 0.0
        %1854 = vmatpush1.msra.mxu0 0.0
        %1855 = vmatprep.subr.mxu0 0.0
        %1856 = vmatpush1.msra.mxu0 0.0
        %1857 = vmatprep.subr.mxu0 0.0
        %1858 = vmatpush1.msra.mxu0 0.0
        %1859 = vmatprep.subr.mxu0 0.0
        %1860 = vmatpush1.msra.mxu0 0.0
        %1861 = vmatprep.subr.mxu0 0.0
        %1862 = vmatpush1.msra.mxu0 0.0
        %1863 = vmatprep.subr.mxu0 0.0
        %1864 = vmatpush1.msra.mxu0 0.0
        %1865 = vmatprep.subr.mxu0 0.0
        %1866 = vmatpush1.msra.mxu0 0.0
        %1867 = vmatprep.subr.mxu0 0.0
        %1868 = vmatpush1.msra.mxu0 0.0
        %1869 = vmatprep.subr.mxu0 0.0
        %1870 = vmatpush1.msra.mxu0 0.0
        %1871 = vmatprep.subr.mxu0 0.0
        %1872 = vmatpush1.msra.mxu0 0.0
        %1873 = vmatprep.subr.mxu0 0.0
        %1874 = vmatpush1.msra.mxu0 0.0
        %1875 = vmatprep.subr.mxu0 0.0
        %1876 = vmatpush1.msra.mxu0 0.0
        %1877 = vmatprep.subr.mxu0 0.0
        %1878 = vmatpush1.msra.mxu0 0.0
        %1879 = vmatprep.subr.mxu0 0.0
        %1880 = vmatpush1.msra.mxu0 0.0
        %1881 = vmatprep.subr.mxu0 0.0
        %1882 = vmatpush1.msra.mxu0 0.0
        %1883 = vmatprep.subr.mxu0 0.0
        %1884 = vmatpush1.msra.mxu0 0.0
        %1885 = vmatprep.subr.mxu0 0.0
        %1886 = vmatpush1.msra.mxu0 0.0
        %1887 = vmatprep.subr.mxu0 0.0
        %1888 = vmatpush1.msra.mxu0 0.0
        %1889 = vmatprep.subr.mxu0 0.0
        %1890 = vmatpush1.msra.mxu0 0.0
        %1891 = vmatprep.subr.mxu0 0.0
        %1892 = vmatpush1.msra.mxu0 0.0
        %1893 = vmatprep.subr.mxu0 0.0
        %1894 = vmatpush1.msra.mxu0 0.0
        %1895 = vmatprep.subr.mxu0 0.0
        %1896 = vmatpush1.msra.mxu0 0.0
        %1897 = vmatprep.subr.mxu0 0.0
        %1898 = vmatpush1.msra.mxu0 0.0
        %1899 = vmatprep.subr.mxu0 0.0
        %1900 = vmatpush1.msra.mxu0 0.0
        %1901 = vmatprep.subr.mxu0 0.0
        %1902 = vmatpush1.msra.mxu0 0.0
        %1903 = vmatprep.subr.mxu0 0.0
        %1904 = vmatpush1.msra.mxu0 0.0
        %1905 = vmatprep.mubr.f32.mxu0 0.0
        %1906 = vmatmul.mubr.f32.gmra.mrb[0].mxu0 %v1839
        %v1907 = vpop.f32.mrb[0].mxu0
        %v1908 = vadd.f32 0.0, %v1907
        %v1909 = vpop.f32.mrb[0].mxu0
        %1910 = vdwg.mxu0
        %v1912 = vsel %vm1193, %v1685, 0
        %1914 = vmatprep.subr.mxu0 0.0
        %1915 = vmatpush1.msra.mxu0 %v1835
        %1916 = vmatprep.subr.mxu0 0.0
        %1917 = vmatpush1.msra.mxu0 0.0
        %1918 = vmatprep.subr.mxu0 0.0
        %1919 = vmatpush1.msra.mxu0 0.0
        %1920 = vmatprep.subr.mxu0 0.0
        %1921 = vmatpush1.msra.mxu0 0.0
        %1922 = vmatprep.subr.mxu0 0.0
        %1923 = vmatpush1.msra.mxu0 0.0
        %1924 = vmatprep.subr.mxu0 0.0
        %1925 = vmatpush1.msra.mxu0 0.0
        %1926 = vmatprep.subr.mxu0 0.0
        %1927 = vmatpush1.msra.mxu0 0.0
        %1928 = vmatprep.subr.mxu0 0.0
        %1929 = vmatpush1.msra.mxu0 0.0
        %1930 = vmatprep.subr.mxu0 0.0
        %1931 = vmatpush1.msra.mxu0 0.0
        %1932 = vmatprep.subr.mxu0 0.0
        %1933 = vmatpush1.msra.mxu0 0.0
        %1934 = vmatprep.subr.mxu0 0.0
        %1935 = vmatpush1.msra.mxu0 0.0
        %1936 = vmatprep.subr.mxu0 0.0
        %1937 = vmatpush1.msra.mxu0 0.0
        %1938 = vmatprep.subr.mxu0 0.0
        %1939 = vmatpush1.msra.mxu0 0.0
        %1940 = vmatprep.subr.mxu0 0.0
        %1941 = vmatpush1.msra.mxu0 0.0
        %1942 = vmatprep.subr.mxu0 0.0
        %1943 = vmatpush1.msra.mxu0 0.0
        %1944 = vmatprep.subr.mxu0 0.0
        %1945 = vmatpush1.msra.mxu0 0.0
        %1946 = vmatprep.subr.mxu0 0.0
        %1947 = vmatpush1.msra.mxu0 0.0
        %1948 = vmatprep.subr.mxu0 0.0
        %1949 = vmatpush1.msra.mxu0 0.0
        %1950 = vmatprep.subr.mxu0 0.0
        %1951 = vmatpush1.msra.mxu0 0.0
        %1952 = vmatprep.subr.mxu0 0.0
        %1953 = vmatpush1.msra.mxu0 0.0
        %1954 = vmatprep.subr.mxu0 0.0
        %1955 = vmatpush1.msra.mxu0 0.0
        %1956 = vmatprep.subr.mxu0 0.0
        %1957 = vmatpush1.msra.mxu0 0.0
        %1958 = vmatprep.subr.mxu0 0.0
        %1959 = vmatpush1.msra.mxu0 0.0
        %1960 = vmatprep.subr.mxu0 0.0
        %1961 = vmatpush1.msra.mxu0 0.0
        %1962 = vmatprep.subr.mxu0 0.0
        %1963 = vmatpush1.msra.mxu0 0.0
        %1964 = vmatprep.subr.mxu0 0.0
        %1965 = vmatpush1.msra.mxu0 0.0
        %1966 = vmatprep.subr.mxu0 0.0
        %1967 = vmatpush1.msra.mxu0 0.0
        %1968 = vmatprep.subr.mxu0 0.0
        %1969 = vmatpush1.msra.mxu0 0.0
        %1970 = vmatprep.subr.mxu0 0.0
        %1971 = vmatpush1.msra.mxu0 0.0
        %1972 = vmatprep.subr.mxu0 0.0
        %1973 = vmatpush1.msra.mxu0 0.0
        %1974 = vmatprep.subr.mxu0 0.0
        %1975 = vmatpush1.msra.mxu0 0.0
        %1976 = vmatprep.subr.mxu0 0.0
        %1977 = vmatpush1.msra.mxu0 0.0
        %1978 = vmatprep.mubr.f32.mxu0 0.0
        %1979 = vmatmul.mubr.f32.gmra.mrb[0].mxu0 %v1912
        %v1980 = vpop.f32.mrb[0].mxu0
        %v1981 = vadd.f32 0.0, %v1980
        %v1982 = vpop.f32.mrb[0].mxu0
        %1983 = vdwg.mxu0
        %v1985 = vsel %vm1193, %v1758, 0
        %1987 = vmatprep.subr.mxu0 0.0
        %1988 = vmatpush1.msra.mxu0 %v1836
        %1989 = vmatprep.subr.mxu0 0.0
        %1990 = vmatpush1.msra.mxu0 0.0
        %1991 = vmatprep.subr.mxu0 0.0
        %1992 = vmatpush1.msra.mxu0 0.0
        %1993 = vmatprep.subr.mxu0 0.0
        %1994 = vmatpush1.msra.mxu0 0.0
        %1995 = vmatprep.subr.mxu0 0.0
        %1996 = vmatpush1.msra.mxu0 0.0
        %1997 = vmatprep.subr.mxu0 0.0
        %1998 = vmatpush1.msra.mxu0 0.0
        %1999 = vmatprep.subr.mxu0 0.0
        %2000 = vmatpush1.msra.mxu0 0.0
        %2001 = vmatprep.subr.mxu0 0.0
        %2002 = vmatpush1.msra.mxu0 0.0
        %2003 = vmatprep.subr.mxu0 0.0
        %2004 = vmatpush1.msra.mxu0 0.0
        %2005 = vmatprep.subr.mxu0 0.0
        %2006 = vmatpush1.msra.mxu0 0.0
        %2007 = vmatprep.subr.mxu0 0.0
        %2008 = vmatpush1.msra.mxu0 0.0
        %2009 = vmatprep.subr.mxu0 0.0
        %2010 = vmatpush1.msra.mxu0 0.0
        %2011 = vmatprep.subr.mxu0 0.0
        %2012 = vmatpush1.msra.mxu0 0.0
        %2013 = vmatprep.subr.mxu0 0.0
        %2014 = vmatpush1.msra.mxu0 0.0
        %2015 = vmatprep.subr.mxu0 0.0
        %2016 = vmatpush1.msra.mxu0 0.0
        %2017 = vmatprep.subr.mxu0 0.0
        %2018 = vmatpush1.msra.mxu0 0.0
        %2019 = vmatprep.subr.mxu0 0.0
        %2020 = vmatpush1.msra.mxu0 0.0
        %2021 = vmatprep.subr.mxu0 0.0
        %2022 = vmatpush1.msra.mxu0 0.0
        %2023 = vmatprep.subr.mxu0 0.0
        %2024 = vmatpush1.msra.mxu0 0.0
        %2025 = vmatprep.subr.mxu0 0.0
        %2026 = vmatpush1.msra.mxu0 0.0
        %2027 = vmatprep.subr.mxu0 0.0
        %2028 = vmatpush1.msra.mxu0 0.0
        %2029 = vmatprep.subr.mxu0 0.0
        %2030 = vmatpush1.msra.mxu0 0.0
        %2031 = vmatprep.subr.mxu0 0.0
        %2032 = vmatpush1.msra.mxu0 0.0
        %2033 = vmatprep.subr.mxu0 0.0
        %2034 = vmatpush1.msra.mxu0 0.0
        %2035 = vmatprep.subr.mxu0 0.0
        %2036 = vmatpush1.msra.mxu0 0.0
        %2037 = vmatprep.subr.mxu0 0.0
        %2038 = vmatpush1.msra.mxu0 0.0
        %2039 = vmatprep.subr.mxu0 0.0
        %2040 = vmatpush1.msra.mxu0 0.0
        %2041 = vmatprep.subr.mxu0 0.0
        %2042 = vmatpush1.msra.mxu0 0.0
        %2043 = vmatprep.subr.mxu0 0.0
        %2044 = vmatpush1.msra.mxu0 0.0
        %2045 = vmatprep.subr.mxu0 0.0
        %2046 = vmatpush1.msra.mxu0 0.0
        %2047 = vmatprep.subr.mxu0 0.0
        %2048 = vmatpush1.msra.mxu0 0.0
        %2049 = vmatprep.subr.mxu0 0.0
        %2050 = vmatpush1.msra.mxu0 0.0
        %2051 = vmatprep.mubr.f32.mxu0 0.0
        %2052 = vmatmul.mubr.f32.gmra.mrb[0].mxu0 %v1985
        %v2053 = vpop.f32.mrb[0].mxu0
        %v2054 = vadd.f32 0.0, %v2053
        %v2055 = vpop.f32.mrb[0].mxu0
        %2056 = vdwg.mxu0
        %v2058 = vsel %vm1193, %v1831, 0
        %2060 = vmatprep.subr.mxu0 0.0
        %2061 = vmatpush1.msra.mxu0 %v1837
        %2062 = vmatprep.subr.mxu0 0.0
        %2063 = vmatpush1.msra.mxu0 0.0
        %2064 = vmatprep.subr.mxu0 0.0
        %2065 = vmatpush1.msra.mxu0 0.0
        %2066 = vmatprep.subr.mxu0 0.0
        %2067 = vmatpush1.msra.mxu0 0.0
        %2068 = vmatprep.subr.mxu0 0.0
        %2069 = vmatpush1.msra.mxu0 0.0
        %2070 = vmatprep.subr.mxu0 0.0
        %2071 = vmatpush1.msra.mxu0 0.0
        %2072 = vmatprep.subr.mxu0 0.0
        %2073 = vmatpush1.msra.mxu0 0.0
        %2074 = vmatprep.subr.mxu0 0.0
        %2075 = vmatpush1.msra.mxu0 0.0
        %2076 = vmatprep.subr.mxu0 0.0
        %2077 = vmatpush1.msra.mxu0 0.0
        %2078 = vmatprep.subr.mxu0 0.0
        %2079 = vmatpush1.msra.mxu0 0.0
        %2080 = vmatprep.subr.mxu0 0.0
        %2081 = vmatpush1.msra.mxu0 0.0
        %2082 = vmatprep.subr.mxu0 0.0
        %2083 = vmatpush1.msra.mxu0 0.0
        %2084 = vmatprep.subr.mxu0 0.0
        %2085 = vmatpush1.msra.mxu0 0.0
        %2086 = vmatprep.subr.mxu0 0.0
        %2087 = vmatpush1.msra.mxu0 0.0
        %2088 = vmatprep.subr.mxu0 0.0
        %2089 = vmatpush1.msra.mxu0 0.0
        %2090 = vmatprep.subr.mxu0 0.0
        %2091 = vmatpush1.msra.mxu0 0.0
        %2092 = vmatprep.subr.mxu0 0.0
        %2093 = vmatpush1.msra.mxu0 0.0
        %2094 = vmatprep.subr.mxu0 0.0
        %2095 = vmatpush1.msra.mxu0 0.0
        %2096 = vmatprep.subr.mxu0 0.0
        %2097 = vmatpush1.msra.mxu0 0.0
        %2098 = vmatprep.subr.mxu0 0.0
        %2099 = vmatpush1.msra.mxu0 0.0
        %2100 = vmatprep.subr.mxu0 0.0
        %2101 = vmatpush1.msra.mxu0 0.0
        %2102 = vmatprep.subr.mxu0 0.0
        %2103 = vmatpush1.msra.mxu0 0.0
        %2104 = vmatprep.subr.mxu0 0.0
        %2105 = vmatpush1.msra.mxu0 0.0
        %2106 = vmatprep.subr.mxu0 0.0
        %2107 = vmatpush1.msra.mxu0 0.0
        %2108 = vmatprep.subr.mxu0 0.0
        %2109 = vmatpush1.msra.mxu0 0.0
        %2110 = vmatprep.subr.mxu0 0.0
        %2111 = vmatpush1.msra.mxu0 0.0
        %2112 = vmatprep.subr.mxu0 0.0
        %2113 = vmatpush1.msra.mxu0 0.0
        %2114 = vmatprep.subr.mxu0 0.0
        %2115 = vmatpush1.msra.mxu0 0.0
        %2116 = vmatprep.subr.mxu0 0.0
        %2117 = vmatpush1.msra.mxu0 0.0
        %2118 = vmatprep.subr.mxu0 0.0
        %2119 = vmatpush1.msra.mxu0 0.0
        %2120 = vmatprep.subr.mxu0 0.0
        %2121 = vmatpush1.msra.mxu0 0.0
        %2122 = vmatprep.subr.mxu0 0.0
        %2123 = vmatpush1.msra.mxu0 0.0
        %2124 = vmatprep.mubr.f32.mxu0 0.0
        %2125 = vmatmul.mubr.f32.gmra.mrb[0].mxu0 %v2058
        %v2126 = vpop.f32.mrb[0].mxu0
        %v2127 = vadd.f32 0.0, %v2126
        %v2128 = vpop.f32.mrb[0].mxu0
        %2129 = vdwg.mxu0
        %v2130 = vsel %vm310, %v1908, 0.0
        %v2131 = vsel %vm310, %v1981, 0.0
        %v2132 = vadd.f32 %v2130, %v2131
        %v2133 = vsel %vm310, %v2054, 0.0
        %v2134 = vadd.f32 %v2132, %v2133
        %v2135 = vsel %vm310, %v2127, 0.0
        %v2136 = vadd.f32 %v2134, %v2135
        %v2137 = vld [vmem:[%s5] sm:$0x1]
        %v2139 = vlaneseq
        %v2140 = vshrl.u32 %v2139, 7
        %v2141 = vsub.s32 0, %v2140
        %v2142 = vrot.slane %v2137, %v2141
        %v2144 = vadd.f32 %v2136, %v2142
        %2145 = vst.msk [vmem:[%s253] sm:$0xff] %vm310, %v2144
        %s2146 = sand.u32 %s164, 1
        %s2147 = scalar_lea.sflag [#allocation3], %s2146
        %s2148 = sand.u32 %s164, 1
        %s2149 = smul.addr %s2148, 8
        %s2150 = scalar_lea.vmem [#allocation2], %s2149
        // Predicated region
        $region45: #{tpu_custom_call.1} parent=43 // pred_check
          %p2151 = pneg %p174
        $region46: #{tpu_custom_call.1} parent=43 // pred_check_branch
          %2153 = sbr.rel (%p2151) target = $region48
        $region47: #{tpu_custom_call.1} parent=43 // pred_region
          %s2155 = ssub.s32 128, 128
          %2156 = vsyncadd %s2147, %s2155
          %s2157 = smul.addr %s20, 128
          %s2158 = scalar_lea.hbm %s6, %s2157
          %s2160 = sshll.u32 %s2150, 4
          %s2161 = int_to_ptr.vmem [resolvable:$true] %s2160
          %2163 = dma.vmem_to_hbm [thread:$0]  %s2161, 128, %s2158, %s2147
        $region48: #{tpu_custom_call.1} parent=43 // pred_fallthru
          _
      $region44: #{tpu_custom_call.1} parent=5 // pred_fallthru
        _
      %p2164 = scmp.le.s32.totalorder 2, %s15
      // Predicated region
      $region49: #{tpu_custom_call.1} parent=5 // pred_check
        %p2165 = pneg %p2164
      $region50: #{tpu_custom_call.1} parent=5 // pred_check_branch
        %2167 = sbr.rel (%p2165) target = $region52
      $region51: #{tpu_custom_call.1} parent=5 // pred_region
        %s2168 = ssub.s32 %s15, 2
        // Predicated region
        $region53: #{tpu_custom_call.1} parent=51 // pred_check
          %p2169 = pneg %p180
        $region54: #{tpu_custom_call.1} parent=51 // pred_check_branch
          %2171 = sbr.rel (%p2169) target = $region56
        $region55: #{tpu_custom_call.1} parent=51 // pred_region
          %s2172 = sand.u32 %s165, 1
          %s2173 = scalar_lea.sflag [#allocation3], %s2172
          %s2174 = sand.u32 %s165, 1
          %s2175 = smul.addr %s2174, 8
          %s2176 = scalar_lea.vmem [#allocation2], %s2175
          %2177 = dma.done %s2173, 128
        $region56: #{tpu_custom_call.1} parent=51 // pred_fallthru
          _
      $region52: #{tpu_custom_call.1} parent=5 // pred_fallthru
        _
    $region6: #{tpu_custom_call.1} parent=1 // loop_footer
      %s19 = sadd.s32 1, %s15
    $region7: #{tpu_custom_call.1} parent=1 // loop_footer_branch
      %14 = sbr.rel target = $region3
    $region8: #{tpu_custom_call.1} parent=1 // loop_exit
      _
    %2178 = vsyncpa [#allocation3], 1
    %s2179 = scalar_lea.sflag [#allocation3], 1
    %2180 = vsyncpa %s2179, 1

</llo_original>
